<compile_context>
chip_gen: v7x
topology: tpu7x:2x2x1
jax: 0.10.0
libtpu: 0.0.40
codegen_flags: <defaults>
</compile_context>

<pallas_src>
import math

import numpy as np
import jax
import jax.numpy as jnp
from jax import lax
from jax.experimental import pallas as pl
from jax.experimental.pallas import tpu as pltpu


def _same_pad(k=1, dil=1):
    return math.ceil(dil * (k - 1))


def _pad_lr(k, r, casual):
    p = _same_pad(k, r)
    if casual:
        return p, 0
    if p % 2 == 1:
        return p // 2 + 1, p // 2
    return p // 2, p // 2


def _conv_offsets(k, rlist, casual):
    """Per-block tap offsets: input time = output time + offset."""
    offsets_per_block = []
    for r in rlist:
        left, _right = _pad_lr(k, r, casual)
        offsets_per_block.append([j * r - left for j in range(k)])
    return offsets_per_block


# ----------------------------- Pallas kernel --------------------------------


def make_resblockset_kernel(d, k, rlist, T, Tp, casual=False, eps=1e-5,
                            matmul_dtype=jnp.float32):
    """Fused kernel: one batch sample per grid step, ALL residual blocks.

    In-kernel activation layout is (channels, Tp): channels on sublanes, time
    on lanes, Tp a multiple of 128 (lane-dense stores).  Per-sample
    InstanceNorm statistics are lane reductions over the T valid lanes.
    """
    C2 = 2 * d
    offsets_per_block = _conv_offsets(k, rlist, casual)
    unique_offsets = sorted({o for offs in offsets_per_block for o in offs if o != 0})
    need_tmask = T < Tp
    inv_t = 1.0 / T
    f32 = jnp.float32

    def kernel(x_ref, ln1w, ln1b, w1, ln2w, ln2b, wk, ln3w, ln3b, w2, o_ref):
        # Grid-invariant lane constants: tiny (1, Tp) vectors built once per
        # grid step (outside the block loop), broadcast against (C, Tp).
        t_idx = lax.broadcasted_iota(jnp.int32, (1, Tp), 1)
        tvalid = (t_idx < T) if need_tmask else None
        tap_masks = {off: jnp.logical_and(t_idx + off >= 0, t_idx + off < T)
                     for off in unique_offsets}

        def inorm_relu(h, gamma, beta):
            # InstanceNorm1d (biased variance) per channel over this sample's
            # T valid lanes, f32 statistics; affine folded into a single
            # scale/shift, then ReLU.
            hm = jnp.where(tvalid, h, 0.0) if need_tmask else h
            mean = jnp.sum(hm, axis=-1, keepdims=True) * inv_t          # (C,1)
            ex2 = jnp.sum(hm * hm, axis=-1, keepdims=True) * inv_t      # (C,1)
            var = ex2 - mean * mean
            scale = gamma * lax.rsqrt(var + eps)
            shift = beta - mean * scale
            return jnp.maximum(h * scale + shift, 0.0)

        def mm(w, h):
            # weights are pre-cast to matmul_dtype in the wrapper; f32 accum.
            return jnp.dot(w, h.astype(matmul_dtype),
                           preferred_element_type=f32)

        x = x_ref[...].astype(f32)                      # (C2, Tp) residual stream
        # NOTE: nb is small (<=5 for max_r=16) so the block loop is unrolled
        # and the stream stays in registers/VMEM.  For large nb/d, move the
        # block index onto an "arbitrary" grid axis with a revisited output.
        for blk, offsets in enumerate(offsets_per_block):
            h = inorm_relu(x, ln1w[blk], ln1b[blk])     # (C2, Tp)
            h = mm(w1[blk], h)                          # (d, Tp)   conv1x1_1
            h = inorm_relu(h, ln2w[blk], ln2b[blk])

            # dilated conv: each tap is a lane roll (XLU) of h, masked at the
            # per-sample zero-padding boundary, contracted with its (d, d)
            # weight slice on the MXU and accumulated in f32.
            conv = None
            for j, off in enumerate(offsets):
                if off == 0:
                    tap = h
                else:
                    tap = pltpu.roll(h, shift=(-off) % Tp, axis=1)
                    tap = jnp.where(tap_masks[off], tap, 0.0)
                part = mm(wk[blk, j], tap)              # (d, Tp)
                conv = part if conv is None else conv + part

            h = inorm_relu(conv, ln3w[blk], ln3b[blk])
            h = mm(w2[blk], h)                          # (C2, Tp)  conv1x1_2
            x = x + h                                   # residual

        o_ref[...] = x.astype(o_ref.dtype)

    return kernel


def resblockset_pallas(x, params_list, rlist, *, d, k, casual=False, eps=1e-5,
                       matmul_dtype=jnp.float32):
    N, C2, T = x.shape
    assert C2 == 2 * d
    nb = len(rlist)
    assert len(params_list) == nb

    # pad time to a lane-dense multiple of 128 (stats/taps masked to real T)
    Tp = ((T + 127) // 128) * 128
    xp = jnp.pad(x, ((0, 0), (0, 0), (0, Tp - T))) if Tp != T else x

    def stack(name):
        return jnp.stack([p[name] for p in params_list], 0)

    ln1w = stack("ln1_w").reshape(nb, C2, 1)
    ln1b = stack("ln1_b").reshape(nb, C2, 1)
    ln2w = stack("ln2_w").reshape(nb, d, 1)
    ln2b = stack("ln2_b").reshape(nb, d, 1)
    ln3w = stack("ln3_w").reshape(nb, d, 1)
    ln3b = stack("ln3_b").reshape(nb, d, 1)
    w1 = stack("w1").astype(matmul_dtype)                               # (nb, d, 2d)
    w2 = stack("w2").astype(matmul_dtype)                               # (nb, 2d, d)
    wk = jnp.transpose(stack("wk"), (0, 3, 1, 2)).astype(matmul_dtype)  # (nb, k, d, d)

    args = (ln1w, ln1b, w1, ln2w, ln2b, wk, ln3w, ln3b, w2)

    kernel = make_resblockset_kernel(d, k, rlist, T, Tp, casual=casual,
                                     eps=eps, matmul_dtype=matmul_dtype)

    x_spec = pl.BlockSpec((None, C2, Tp), lambda i: (i, 0, 0))
    # parameters: full-array resident blocks (same block every step => no re-DMA)
    param_specs = [pl.BlockSpec(a.shape, lambda i, nd=a.ndim: (0,) * nd)
                   for a in args]

    # explicit VMEM budget: double-buffered in/out sample blocks + params,
    # capped at 64 MiB so the setting stays legal on v7x (64 MiB / TC).
    blk_bytes = C2 * Tp * 4
    param_bytes = sum(int(np.prod(a.shape)) * a.dtype.itemsize for a in args)
    est = 4 * blk_bytes + 2 * param_bytes + (2 << 20)
    vmem_limit = int(min(64 << 20, max(16 << 20, 2 * est)))

    outp = pl.pallas_call(
        kernel,
        out_shape=jax.ShapeDtypeStruct((N, C2, Tp), x.dtype),
        grid_spec=pltpu.PrefetchScalarGridSpec(
            num_scalar_prefetch=0,
            grid=(N,),                       # one sample per step; >=2 steps
            in_specs=[x_spec] + param_specs,
            out_specs=pl.BlockSpec((None, C2, Tp), lambda i: (i, 0, 0)),
        ),
        compiler_params=pltpu.CompilerParams(
            dimension_semantics=("parallel",),
            vmem_limit_bytes=vmem_limit),
    )(xp, *args)

    return outp[:, :, :T] if Tp != T else outp


# --------------------------- pure-JAX reference ------------------------------


def ref_resblock(x, params, *, d, k, r, casual=False, eps=1e-5):
    hi = lax.Precision.HIGHEST

    def inorm(h, w, b):
        mean = h.mean(axis=-1, keepdims=True)
        var = ((h - mean) ** 2).mean(axis=-1, keepdims=True)
        return (h - mean) / jnp.sqrt(var + eps) * w[None, :, None] + b[None, :, None]

    h = jnp.maximum(inorm(x, params["ln1_w"], params["ln1_b"]), 0.0)
    h = jnp.einsum("oc,ncl->nol", params["w1"], h, precision=hi)
    h = jnp.maximum(inorm(h, params["ln2_w"], params["ln2_b"]), 0.0)
    left, right = _pad_lr(k, r, casual)
    hp = jnp.pad(h, ((0, 0), (0, 0), (left, right)))
    h = lax.conv_general_dilated(
        hp, params["wk"], window_strides=(1,), padding="VALID",
        rhs_dilation=(r,), dimension_numbers=("NCH", "OIH", "NCH"),
        precision=hi)
    h = jnp.maximum(inorm(h, params["ln3_w"], params["ln3_b"]), 0.0)
    h = jnp.einsum("oc,ncl->nol", params["w2"], h, precision=hi)
    return h + x


# ------------------------------ param init ----------------------------------


def init_resblock_params(key, d, k):
    ks = jax.random.split(key, 9)

    def u(kk, shape, fan_in):
        s = 1.0 / math.sqrt(fan_in)
        return jax.random.uniform(kk, shape, jnp.float32, -s, s)

    return {
        "ln1_w": 1.0 + 0.1 * jax.random.normal(ks[0], (2 * d,), jnp.float32),
        "ln1_b": 0.1 * jax.random.normal(ks[1], (2 * d,), jnp.float32),
        "w1": u(ks[2], (d, 2 * d), 2 * d),          # Conv1d(2d->d, k=1), no bias
        "ln2_w": 1.0 + 0.1 * jax.random.normal(ks[3], (d,), jnp.float32),
        "ln2_b": 0.1 * jax.random.normal(ks[4], (d,), jnp.float32),
        "wk": u(ks[5], (d, d, k), d * k),           # Conv1d(d->d, k, dil=r), no bias
        "ln3_w": 1.0 + 0.1 * jax.random.normal(ks[6], (d,), jnp.float32),
        "ln3_b": 0.1 * jax.random.normal(ks[7], (d,), jnp.float32),
        "w2": u(ks[8], (2 * d, d), d),              # Conv1d(d->2d, k=1), no bias
    }


if __name__ == "__main__":
    d, max_r, k = 4, 4, 3          # ResBlockSet(d=4, max_r=4, k=3, casual=False)
    N, T = 2, 16                    # input (N, 2d, T) as the blocks expect
    casual = False

    key = jax.random.PRNGKey(0)
    key, xk = jax.random.split(key)
    x = jax.random.normal(xk, (N, 2 * d, T), jnp.float32)

    rlist = [1 << i for i in range(15) if (1 << i) <= max_r]   # [1, 2, 4]
    params_list = []
    for _ in rlist:
        key, pk = jax.random.split(key)
        params_list.append(init_resblock_params(pk, d, k))

    # fused Pallas kernel, f32 matmul operands
    out = resblockset_pallas(x, params_list, rlist, d=d, k=k, casual=casual)
    out = jax.block_until_ready(out)

    # pure-JAX reference (HIGHEST matmul precision)
    ref = x
    for r, params in zip(rlist, params_list):
        ref = ref_resblock(ref, params, d=d, k=k, r=r, casual=casual)
    ref = jax.block_until_ready(ref)

    assert out.shape == (N, 2 * d, T) and out.dtype == jnp.float32
    # tolerance tightened vs. the previous version (5e-2 -> 3e-2); slack left
    # for TPU default f32-matmul precision differences between XLA and Mosaic.
    np.testing.assert_allclose(np.asarray(out), np.asarray(ref),
                               rtol=3e-2, atol=3e-2)

    # bf16 matmul-operand variant (native on v5e/v6e/v7x MXUs); f32 accumulation
    # and f32 InstanceNorm statistics, so only a loose tolerance is required.
    out_bf16 = resblockset_pallas(x, params_list, rlist, d=d, k=k,
                                  casual=casual, matmul_dtype=jnp.bfloat16)
    out_bf16 = jax.block_until_ready(out_bf16)
    np.testing.assert_allclose(np.asarray(out_bf16), np.asarray(ref),
                               rtol=2e-1, atol=2e-1)

    print("KERNEL_OK")
</pallas_src>

<mosaic_0001>
module attributes {stable_mosaic.version = 11 : i64} {
  func.func @kernel(%arg0: i32, %arg1: memref<1x8x128xf32, #tpu.memory_space<vmem>>, %arg2: memref<3x8x1xf32, #tpu.memory_space<vmem>>, %arg3: memref<3x8x1xf32, #tpu.memory_space<vmem>>, %arg4: memref<3x4x8xf32, #tpu.memory_space<vmem>>, %arg5: memref<3x4x1xf32, #tpu.memory_space<vmem>>, %arg6: memref<3x4x1xf32, #tpu.memory_space<vmem>>, %arg7: memref<3x3x4x4xf32, #tpu.memory_space<vmem>>, %arg8: memref<3x4x1xf32, #tpu.memory_space<vmem>>, %arg9: memref<3x4x1xf32, #tpu.memory_space<vmem>>, %arg10: memref<3x8x4xf32, #tpu.memory_space<vmem>>, %arg11: memref<1x8x128xf32, #tpu.memory_space<vmem>>) attributes {dimension_semantics = [#tpu.dimension_semantics<parallel>], iteration_bounds = array<i64: 2>, scalar_prefetch = 0 : i64, scratch_operands = 0 : i64, tpu.core_type = #tpu.core_type<tc>, window_params = [{transform_indices = @transform_0, window_bounds = array<i64: 1, 8, 128>}, {pipeline_mode = #tpu.pipeline_mode<synchronous>, transform_indices = @transform_1, window_bounds = array<i64: 3, 8, 1>}, {pipeline_mode = #tpu.pipeline_mode<synchronous>, transform_indices = @transform_2, window_bounds = array<i64: 3, 8, 1>}, {pipeline_mode = #tpu.pipeline_mode<synchronous>, transform_indices = @transform_3, window_bounds = array<i64: 3, 4, 8>}, {pipeline_mode = #tpu.pipeline_mode<synchronous>, transform_indices = @transform_4, window_bounds = array<i64: 3, 4, 1>}, {pipeline_mode = #tpu.pipeline_mode<synchronous>, transform_indices = @transform_5, window_bounds = array<i64: 3, 4, 1>}, {pipeline_mode = #tpu.pipeline_mode<synchronous>, transform_indices = @transform_6, window_bounds = array<i64: 3, 3, 4, 4>}, {pipeline_mode = #tpu.pipeline_mode<synchronous>, transform_indices = @transform_7, window_bounds = array<i64: 3, 4, 1>}, {pipeline_mode = #tpu.pipeline_mode<synchronous>, transform_indices = @transform_8, window_bounds = array<i64: 3, 4, 1>}, {pipeline_mode = #tpu.pipeline_mode<synchronous>, transform_indices = @transform_9, window_bounds = array<i64: 3, 8, 4>}, {transform_indices = @transform_10, window_bounds = array<i64: 1, 8, 128>}]} {
    %0 = tpu.iota {dimensions = array<i32: 1>} : vector<1x128xi32>
    %c16_i32 = arith.constant 16 : i32
    %1 = vector.broadcast %c16_i32 : i32 to vector<1x128xi32>
    %2 = arith.cmpi slt, %0, %1 : vector<1x128xi32>
    %c-4_i32 = arith.constant -4 : i32
    %3 = vector.broadcast %c-4_i32 : i32 to vector<1x128xi32>
    %4 = arith.addi %0, %3 : vector<1x128xi32>
    %c0_i32 = arith.constant 0 : i32
    %5 = vector.broadcast %c0_i32 : i32 to vector<1x128xi32>
    %6 = arith.cmpi sge, %4, %5 : vector<1x128xi32>
    %c-4_i32_0 = arith.constant -4 : i32
    %7 = vector.broadcast %c-4_i32_0 : i32 to vector<1x128xi32>
    %8 = arith.addi %0, %7 : vector<1x128xi32>
    %c16_i32_1 = arith.constant 16 : i32
    %9 = vector.broadcast %c16_i32_1 : i32 to vector<1x128xi32>
    %10 = arith.cmpi slt, %8, %9 : vector<1x128xi32>
    %11 = arith.andi %6, %10 : vector<1x128xi1>
    %c-2_i32 = arith.constant -2 : i32
    %12 = vector.broadcast %c-2_i32 : i32 to vector<1x128xi32>
    %13 = arith.addi %0, %12 : vector<1x128xi32>
    %c0_i32_2 = arith.constant 0 : i32
    %14 = vector.broadcast %c0_i32_2 : i32 to vector<1x128xi32>
    %15 = arith.cmpi sge, %13, %14 : vector<1x128xi32>
    %c-2_i32_3 = arith.constant -2 : i32
    %16 = vector.broadcast %c-2_i32_3 : i32 to vector<1x128xi32>
    %17 = arith.addi %0, %16 : vector<1x128xi32>
    %c16_i32_4 = arith.constant 16 : i32
    %18 = vector.broadcast %c16_i32_4 : i32 to vector<1x128xi32>
    %19 = arith.cmpi slt, %17, %18 : vector<1x128xi32>
    %20 = arith.andi %15, %19 : vector<1x128xi1>
    %c-1_i32 = arith.constant -1 : i32
    %21 = vector.broadcast %c-1_i32 : i32 to vector<1x128xi32>
    %22 = arith.addi %0, %21 : vector<1x128xi32>
    %c0_i32_5 = arith.constant 0 : i32
    %23 = vector.broadcast %c0_i32_5 : i32 to vector<1x128xi32>
    %24 = arith.cmpi sge, %22, %23 : vector<1x128xi32>
    %c-1_i32_6 = arith.constant -1 : i32
    %25 = vector.broadcast %c-1_i32_6 : i32 to vector<1x128xi32>
    %26 = arith.addi %0, %25 : vector<1x128xi32>
    %c16_i32_7 = arith.constant 16 : i32
    %27 = vector.broadcast %c16_i32_7 : i32 to vector<1x128xi32>
    %28 = arith.cmpi slt, %26, %27 : vector<1x128xi32>
    %29 = arith.andi %24, %28 : vector<1x128xi1>
    %c1_i32 = arith.constant 1 : i32
    %30 = vector.broadcast %c1_i32 : i32 to vector<1x128xi32>
    %31 = arith.addi %0, %30 : vector<1x128xi32>
    %c0_i32_8 = arith.constant 0 : i32
    %32 = vector.broadcast %c0_i32_8 : i32 to vector<1x128xi32>
    %33 = arith.cmpi sge, %31, %32 : vector<1x128xi32>
    %c1_i32_9 = arith.constant 1 : i32
    %34 = vector.broadcast %c1_i32_9 : i32 to vector<1x128xi32>
    %35 = arith.addi %0, %34 : vector<1x128xi32>
    %c16_i32_10 = arith.constant 16 : i32
    %36 = vector.broadcast %c16_i32_10 : i32 to vector<1x128xi32>
    %37 = arith.cmpi slt, %35, %36 : vector<1x128xi32>
    %38 = arith.andi %33, %37 : vector<1x128xi1>
    %c2_i32 = arith.constant 2 : i32
    %39 = vector.broadcast %c2_i32 : i32 to vector<1x128xi32>
    %40 = arith.addi %0, %39 : vector<1x128xi32>
    %c0_i32_11 = arith.constant 0 : i32
    %41 = vector.broadcast %c0_i32_11 : i32 to vector<1x128xi32>
    %42 = arith.cmpi sge, %40, %41 : vector<1x128xi32>
    %c2_i32_12 = arith.constant 2 : i32
    %43 = vector.broadcast %c2_i32_12 : i32 to vector<1x128xi32>
    %44 = arith.addi %0, %43 : vector<1x128xi32>
    %c16_i32_13 = arith.constant 16 : i32
    %45 = vector.broadcast %c16_i32_13 : i32 to vector<1x128xi32>
    %46 = arith.cmpi slt, %44, %45 : vector<1x128xi32>
    %47 = arith.andi %42, %46 : vector<1x128xi1>
    %c4_i32 = arith.constant 4 : i32
    %48 = vector.broadcast %c4_i32 : i32 to vector<1x128xi32>
    %49 = arith.addi %0, %48 : vector<1x128xi32>
    %c0_i32_14 = arith.constant 0 : i32
    %50 = vector.broadcast %c0_i32_14 : i32 to vector<1x128xi32>
    %51 = arith.cmpi sge, %49, %50 : vector<1x128xi32>
    %c4_i32_15 = arith.constant 4 : i32
    %52 = vector.broadcast %c4_i32_15 : i32 to vector<1x128xi32>
    %53 = arith.addi %0, %52 : vector<1x128xi32>
    %c16_i32_16 = arith.constant 16 : i32
    %54 = vector.broadcast %c16_i32_16 : i32 to vector<1x128xi32>
    %55 = arith.cmpi slt, %53, %54 : vector<1x128xi32>
    %56 = arith.andi %51, %55 : vector<1x128xi1>
    %c0 = arith.constant 0 : index
    %c0_17 = arith.constant 0 : index
    %c0_18 = arith.constant 0 : index
    %57 = vector.load %arg1[%c0, %c0_17, %c0_18] : memref<1x8x128xf32, #tpu.memory_space<vmem>>, vector<1x8x128xf32>
    %58 = vector.shape_cast %57 : vector<1x8x128xf32> to vector<8x128xf32>
    %c0_19 = arith.constant 0 : index
    %c0_20 = arith.constant 0 : index
    %c0_21 = arith.constant 0 : index
    %59 = vector.load %arg2[%c0_19, %c0_20, %c0_21] : memref<3x8x1xf32, #tpu.memory_space<vmem>>, vector<1x8x1xf32>
    %60 = vector.shape_cast %59 : vector<1x8x1xf32> to vector<8x1xf32>
    %c0_22 = arith.constant 0 : index
    %c0_23 = arith.constant 0 : index
    %c0_24 = arith.constant 0 : index
    %61 = vector.load %arg3[%c0_22, %c0_23, %c0_24] : memref<3x8x1xf32, #tpu.memory_space<vmem>>, vector<1x8x1xf32>
    %62 = vector.shape_cast %61 : vector<1x8x1xf32> to vector<8x1xf32>
    %cst = arith.constant 0.000000e+00 : f32
    %63 = vector.shape_cast %2 : vector<1x128xi1> to vector<1x128xi1>
    %64 = vector.broadcast %63 : vector<1x128xi1> to vector<8x128xi1>
    %65 = vector.broadcast %cst : f32 to vector<8x128xf32>
    %66 = arith.select %64, %58, %65 : vector<8x128xi1>, vector<8x128xf32>
    %cst_25 = arith.constant dense<0.000000e+00> : vector<8xf32>
    %67 = vector.multi_reduction <add>, %66, %cst_25 [1] : vector<8x128xf32> to vector<8xf32>
    %68 = vector.shape_cast %67 : vector<8xf32> to vector<8x1xf32>
    %cst_26 = arith.constant 6.250000e-02 : f32
    %69 = vector.broadcast %cst_26 : f32 to vector<8x1xf32>
    %70 = arith.mulf %68, %69 : vector<8x1xf32>
    %71 = arith.mulf %66, %66 : vector<8x128xf32>
    %cst_27 = arith.constant dense<0.000000e+00> : vector<8xf32>
    %72 = vector.multi_reduction <add>, %71, %cst_27 [1] : vector<8x128xf32> to vector<8xf32>
    %73 = vector.shape_cast %72 : vector<8xf32> to vector<8x1xf32>
    %cst_28 = arith.constant 6.250000e-02 : f32
    %74 = vector.broadcast %cst_28 : f32 to vector<8x1xf32>
    %75 = arith.mulf %73, %74 : vector<8x1xf32>
    %76 = arith.mulf %70, %70 : vector<8x1xf32>
    %77 = arith.subf %75, %76 : vector<8x1xf32>
    %cst_29 = arith.constant 9.99999974E-6 : f32
    %78 = vector.broadcast %cst_29 : f32 to vector<8x1xf32>
    %79 = arith.addf %77, %78 : vector<8x1xf32>
    %80 = math.rsqrt %79 : vector<8x1xf32>
    %81 = arith.mulf %60, %80 : vector<8x1xf32>
    %82 = arith.mulf %70, %81 : vector<8x1xf32>
    %83 = arith.subf %62, %82 : vector<8x1xf32>
    %84 = vector.broadcast %81 : vector<8x1xf32> to vector<8x128xf32>
    %85 = arith.mulf %58, %84 : vector<8x128xf32>
    %86 = vector.broadcast %83 : vector<8x1xf32> to vector<8x128xf32>
    %87 = arith.addf %85, %86 : vector<8x128xf32>
    %cst_30 = arith.constant 0.000000e+00 : f32
    %88 = vector.broadcast %cst_30 : f32 to vector<8x128xf32>
    %89 = arith.maximumf %87, %88 : vector<8x128xf32>
    %c0_31 = arith.constant 0 : index
    %c0_32 = arith.constant 0 : index
    %c0_33 = arith.constant 0 : index
    %90 = vector.load %arg4[%c0_31, %c0_32, %c0_33] : memref<3x4x8xf32, #tpu.memory_space<vmem>>, vector<1x4x8xf32>
    %91 = vector.shape_cast %90 : vector<1x4x8xf32> to vector<4x8xf32>
    %cst_34 = arith.constant dense<0.000000e+00> : vector<4x128xf32>
    %92 = tpu.matmul %91, %89, %cst_34 {dimension_numbers = #tpu.dot_dimension_numbers<[1], [0], [0], [1], [0, 0, 1, 1], [], []>} : vector<4x8xf32>, vector<8x128xf32>, vector<4x128xf32> -> vector<4x128xf32>
    %c0_35 = arith.constant 0 : index
    %c0_36 = arith.constant 0 : index
    %c0_37 = arith.constant 0 : index
    %93 = vector.load %arg5[%c0_35, %c0_36, %c0_37] : memref<3x4x1xf32, #tpu.memory_space<vmem>>, vector<1x4x1xf32>
    %94 = vector.shape_cast %93 : vector<1x4x1xf32> to vector<4x1xf32>
    %c0_38 = arith.constant 0 : index
    %c0_39 = arith.constant 0 : index
    %c0_40 = arith.constant 0 : index
    %95 = vector.load %arg6[%c0_38, %c0_39, %c0_40] : memref<3x4x1xf32, #tpu.memory_space<vmem>>, vector<1x4x1xf32>
    %96 = vector.shape_cast %95 : vector<1x4x1xf32> to vector<4x1xf32>
    %cst_41 = arith.constant 0.000000e+00 : f32
    %97 = vector.shape_cast %2 : vector<1x128xi1> to vector<1x128xi1>
    %98 = vector.broadcast %97 : vector<1x128xi1> to vector<4x128xi1>
    %99 = vector.broadcast %cst_41 : f32 to vector<4x128xf32>
    %100 = arith.select %98, %92, %99 : vector<4x128xi1>, vector<4x128xf32>
    %cst_42 = arith.constant dense<0.000000e+00> : vector<4xf32>
    %101 = vector.multi_reduction <add>, %100, %cst_42 [1] : vector<4x128xf32> to vector<4xf32>
    %102 = vector.shape_cast %101 : vector<4xf32> to vector<4x1xf32>
    %cst_43 = arith.constant 6.250000e-02 : f32
    %103 = vector.broadcast %cst_43 : f32 to vector<4x1xf32>
    %104 = arith.mulf %102, %103 : vector<4x1xf32>
    %105 = arith.mulf %100, %100 : vector<4x128xf32>
    %cst_44 = arith.constant dense<0.000000e+00> : vector<4xf32>
    %106 = vector.multi_reduction <add>, %105, %cst_44 [1] : vector<4x128xf32> to vector<4xf32>
    %107 = vector.shape_cast %106 : vector<4xf32> to vector<4x1xf32>
    %cst_45 = arith.constant 6.250000e-02 : f32
    %108 = vector.broadcast %cst_45 : f32 to vector<4x1xf32>
    %109 = arith.mulf %107, %108 : vector<4x1xf32>
    %110 = arith.mulf %104, %104 : vector<4x1xf32>
    %111 = arith.subf %109, %110 : vector<4x1xf32>
    %cst_46 = arith.constant 9.99999974E-6 : f32
    %112 = vector.broadcast %cst_46 : f32 to vector<4x1xf32>
    %113 = arith.addf %111, %112 : vector<4x1xf32>
    %114 = math.rsqrt %113 : vector<4x1xf32>
    %115 = arith.mulf %94, %114 : vector<4x1xf32>
    %116 = arith.mulf %104, %115 : vector<4x1xf32>
    %117 = arith.subf %96, %116 : vector<4x1xf32>
    %118 = vector.broadcast %115 : vector<4x1xf32> to vector<4x128xf32>
    %119 = arith.mulf %92, %118 : vector<4x128xf32>
    %120 = vector.broadcast %117 : vector<4x1xf32> to vector<4x128xf32>
    %121 = arith.addf %119, %120 : vector<4x128xf32>
    %cst_47 = arith.constant 0.000000e+00 : f32
    %122 = vector.broadcast %cst_47 : f32 to vector<4x128xf32>
    %123 = arith.maximumf %121, %122 : vector<4x128xf32>
    %c1_i32_48 = arith.constant 1 : i32
    %124 = tpu.dynamic_rotate %123 by %c1_i32_48 dim 1 : vector<4x128xf32>, i32 -> vector<4x128xf32>
    %cst_49 = arith.constant 0.000000e+00 : f32
    %125 = vector.shape_cast %29 : vector<1x128xi1> to vector<1x128xi1>
    %126 = vector.broadcast %125 : vector<1x128xi1> to vector<4x128xi1>
    %127 = vector.broadcast %cst_49 : f32 to vector<4x128xf32>
    %128 = arith.select %126, %124, %127 : vector<4x128xi1>, vector<4x128xf32>
    %c0_50 = arith.constant 0 : index
    %c0_51 = arith.constant 0 : index
    %c0_52 = arith.constant 0 : index
    %c0_53 = arith.constant 0 : index
    %129 = vector.load %arg7[%c0_50, %c0_51, %c0_52, %c0_53] : memref<3x3x4x4xf32, #tpu.memory_space<vmem>>, vector<1x1x4x4xf32>
    %130 = vector.shape_cast %129 : vector<1x1x4x4xf32> to vector<4x4xf32>
    %cst_54 = arith.constant dense<0.000000e+00> : vector<4x128xf32>
    %131 = tpu.matmul %130, %128, %cst_54 {dimension_numbers = #tpu.dot_dimension_numbers<[1], [0], [0], [1], [0, 0, 1, 1], [], []>} : vector<4x4xf32>, vector<4x128xf32>, vector<4x128xf32> -> vector<4x128xf32>
    %c0_55 = arith.constant 0 : index
    %c1 = arith.constant 1 : index
    %c0_56 = arith.constant 0 : index
    %c0_57 = arith.constant 0 : index
    %132 = vector.load %arg7[%c0_55, %c1, %c0_56, %c0_57] : memref<3x3x4x4xf32, #tpu.memory_space<vmem>>, vector<1x1x4x4xf32>
    %133 = vector.shape_cast %132 : vector<1x1x4x4xf32> to vector<4x4xf32>
    %cst_58 = arith.constant dense<0.000000e+00> : vector<4x128xf32>
    %134 = tpu.matmul %133, %123, %cst_58 {dimension_numbers = #tpu.dot_dimension_numbers<[1], [0], [0], [1], [0, 0, 1, 1], [], []>} : vector<4x4xf32>, vector<4x128xf32>, vector<4x128xf32> -> vector<4x128xf32>
    %135 = arith.addf %131, %134 : vector<4x128xf32>
    %c127_i32 = arith.constant 127 : i32
    %136 = tpu.dynamic_rotate %123 by %c127_i32 dim 1 : vector<4x128xf32>, i32 -> vector<4x128xf32>
    %cst_59 = arith.constant 0.000000e+00 : f32
    %137 = vector.shape_cast %38 : vector<1x128xi1> to vector<1x128xi1>
    %138 = vector.broadcast %137 : vector<1x128xi1> to vector<4x128xi1>
    %139 = vector.broadcast %cst_59 : f32 to vector<4x128xf32>
    %140 = arith.select %138, %136, %139 : vector<4x128xi1>, vector<4x128xf32>
    %c0_60 = arith.constant 0 : index
    %c2 = arith.constant 2 : index
    %c0_61 = arith.constant 0 : index
    %c0_62 = arith.constant 0 : index
    %141 = vector.load %arg7[%c0_60, %c2, %c0_61, %c0_62] : memref<3x3x4x4xf32, #tpu.memory_space<vmem>>, vector<1x1x4x4xf32>
    %142 = vector.shape_cast %141 : vector<1x1x4x4xf32> to vector<4x4xf32>
    %cst_63 = arith.constant dense<0.000000e+00> : vector<4x128xf32>
    %143 = tpu.matmul %142, %140, %cst_63 {dimension_numbers = #tpu.dot_dimension_numbers<[1], [0], [0], [1], [0, 0, 1, 1], [], []>} : vector<4x4xf32>, vector<4x128xf32>, vector<4x128xf32> -> vector<4x128xf32>
    %144 = arith.addf %135, %143 : vector<4x128xf32>
    %c0_64 = arith.constant 0 : index
    %c0_65 = arith.constant 0 : index
    %c0_66 = arith.constant 0 : index
    %145 = vector.load %arg8[%c0_64, %c0_65, %c0_66] : memref<3x4x1xf32, #tpu.memory_space<vmem>>, vector<1x4x1xf32>
    %146 = vector.shape_cast %145 : vector<1x4x1xf32> to vector<4x1xf32>
    %c0_67 = arith.constant 0 : index
    %c0_68 = arith.constant 0 : index
    %c0_69 = arith.constant 0 : index
    %147 = vector.load %arg9[%c0_67, %c0_68, %c0_69] : memref<3x4x1xf32, #tpu.memory_space<vmem>>, vector<1x4x1xf32>
    %148 = vector.shape_cast %147 : vector<1x4x1xf32> to vector<4x1xf32>
    %cst_70 = arith.constant 0.000000e+00 : f32
    %149 = vector.shape_cast %2 : vector<1x128xi1> to vector<1x128xi1>
    %150 = vector.broadcast %149 : vector<1x128xi1> to vector<4x128xi1>
    %151 = vector.broadcast %cst_70 : f32 to vector<4x128xf32>
    %152 = arith.select %150, %144, %151 : vector<4x128xi1>, vector<4x128xf32>
    %cst_71 = arith.constant dense<0.000000e+00> : vector<4xf32>
    %153 = vector.multi_reduction <add>, %152, %cst_71 [1] : vector<4x128xf32> to vector<4xf32>
    %154 = vector.shape_cast %153 : vector<4xf32> to vector<4x1xf32>
    %cst_72 = arith.constant 6.250000e-02 : f32
    %155 = vector.broadcast %cst_72 : f32 to vector<4x1xf32>
    %156 = arith.mulf %154, %155 : vector<4x1xf32>
    %157 = arith.mulf %152, %152 : vector<4x128xf32>
    %cst_73 = arith.constant dense<0.000000e+00> : vector<4xf32>
    %158 = vector.multi_reduction <add>, %157, %cst_73 [1] : vector<4x128xf32> to vector<4xf32>
    %159 = vector.shape_cast %158 : vector<4xf32> to vector<4x1xf32>
    %cst_74 = arith.constant 6.250000e-02 : f32
    %160 = vector.broadcast %cst_74 : f32 to vector<4x1xf32>
    %161 = arith.mulf %159, %160 : vector<4x1xf32>
    %162 = arith.mulf %156, %156 : vector<4x1xf32>
    %163 = arith.subf %161, %162 : vector<4x1xf32>
    %cst_75 = arith.constant 9.99999974E-6 : f32
    %164 = vector.broadcast %cst_75 : f32 to vector<4x1xf32>
    %165 = arith.addf %163, %164 : vector<4x1xf32>
    %166 = math.rsqrt %165 : vector<4x1xf32>
    %167 = arith.mulf %146, %166 : vector<4x1xf32>
    %168 = arith.mulf %156, %167 : vector<4x1xf32>
    %169 = arith.subf %148, %168 : vector<4x1xf32>
    %170 = vector.broadcast %167 : vector<4x1xf32> to vector<4x128xf32>
    %171 = arith.mulf %144, %170 : vector<4x128xf32>
    %172 = vector.broadcast %169 : vector<4x1xf32> to vector<4x128xf32>
    %173 = arith.addf %171, %172 : vector<4x128xf32>
    %cst_76 = arith.constant 0.000000e+00 : f32
    %174 = vector.broadcast %cst_76 : f32 to vector<4x128xf32>
    %175 = arith.maximumf %173, %174 : vector<4x128xf32>
    %c0_77 = arith.constant 0 : index
    %c0_78 = arith.constant 0 : index
    %c0_79 = arith.constant 0 : index
    %176 = vector.load %arg10[%c0_77, %c0_78, %c0_79] : memref<3x8x4xf32, #tpu.memory_space<vmem>>, vector<1x8x4xf32>
    %177 = vector.shape_cast %176 : vector<1x8x4xf32> to vector<8x4xf32>
    %cst_80 = arith.constant dense<0.000000e+00> : vector<8x128xf32>
    %178 = tpu.matmul %177, %175, %cst_80 {dimension_numbers = #tpu.dot_dimension_numbers<[1], [0], [0], [1], [0, 0, 1, 1], [], []>} : vector<8x4xf32>, vector<4x128xf32>, vector<8x128xf32> -> vector<8x128xf32>
    %179 = arith.addf %58, %178 : vector<8x128xf32>
    %c1_81 = arith.constant 1 : index
    %c0_82 = arith.constant 0 : index
    %c0_83 = arith.constant 0 : index
    %180 = vector.load %arg2[%c1_81, %c0_82, %c0_83] : memref<3x8x1xf32, #tpu.memory_space<vmem>>, vector<1x8x1xf32>
    %181 = vector.shape_cast %180 : vector<1x8x1xf32> to vector<8x1xf32>
    %c1_84 = arith.constant 1 : index
    %c0_85 = arith.constant 0 : index
    %c0_86 = arith.constant 0 : index
    %182 = vector.load %arg3[%c1_84, %c0_85, %c0_86] : memref<3x8x1xf32, #tpu.memory_space<vmem>>, vector<1x8x1xf32>
    %183 = vector.shape_cast %182 : vector<1x8x1xf32> to vector<8x1xf32>
    %cst_87 = arith.constant 0.000000e+00 : f32
    %184 = vector.shape_cast %2 : vector<1x128xi1> to vector<1x128xi1>
    %185 = vector.broadcast %184 : vector<1x128xi1> to vector<8x128xi1>
    %186 = vector.broadcast %cst_87 : f32 to vector<8x128xf32>
    %187 = arith.select %185, %179, %186 : vector<8x128xi1>, vector<8x128xf32>
    %cst_88 = arith.constant dense<0.000000e+00> : vector<8xf32>
    %188 = vector.multi_reduction <add>, %187, %cst_88 [1] : vector<8x128xf32> to vector<8xf32>
    %189 = vector.shape_cast %188 : vector<8xf32> to vector<8x1xf32>
    %cst_89 = arith.constant 6.250000e-02 : f32
    %190 = vector.broadcast %cst_89 : f32 to vector<8x1xf32>
    %191 = arith.mulf %189, %190 : vector<8x1xf32>
    %192 = arith.mulf %187, %187 : vector<8x128xf32>
    %cst_90 = arith.constant dense<0.000000e+00> : vector<8xf32>
    %193 = vector.multi_reduction <add>, %192, %cst_90 [1] : vector<8x128xf32> to vector<8xf32>
    %194 = vector.shape_cast %193 : vector<8xf32> to vector<8x1xf32>
    %cst_91 = arith.constant 6.250000e-02 : f32
    %195 = vector.broadcast %cst_91 : f32 to vector<8x1xf32>
    %196 = arith.mulf %194, %195 : vector<8x1xf32>
    %197 = arith.mulf %191, %191 : vector<8x1xf32>
    %198 = arith.subf %196, %197 : vector<8x1xf32>
    %cst_92 = arith.constant 9.99999974E-6 : f32
    %199 = vector.broadcast %cst_92 : f32 to vector<8x1xf32>
    %200 = arith.addf %198, %199 : vector<8x1xf32>
    %201 = math.rsqrt %200 : vector<8x1xf32>
    %202 = arith.mulf %181, %201 : vector<8x1xf32>
    %203 = arith.mulf %191, %202 : vector<8x1xf32>
    %204 = arith.subf %183, %203 : vector<8x1xf32>
    %205 = vector.broadcast %202 : vector<8x1xf32> to vector<8x128xf32>
    %206 = arith.mulf %179, %205 : vector<8x128xf32>
    %207 = vector.broadcast %204 : vector<8x1xf32> to vector<8x128xf32>
    %208 = arith.addf %206, %207 : vector<8x128xf32>
    %cst_93 = arith.constant 0.000000e+00 : f32
    %209 = vector.broadcast %cst_93 : f32 to vector<8x128xf32>
    %210 = arith.maximumf %208, %209 : vector<8x128xf32>
    %c1_94 = arith.constant 1 : index
    %c0_95 = arith.constant 0 : index
    %c0_96 = arith.constant 0 : index
    %211 = vector.load %arg4[%c1_94, %c0_95, %c0_96] : memref<3x4x8xf32, #tpu.memory_space<vmem>>, vector<1x4x8xf32>
    %212 = vector.shape_cast %211 : vector<1x4x8xf32> to vector<4x8xf32>
    %cst_97 = arith.constant dense<0.000000e+00> : vector<4x128xf32>
    %213 = tpu.matmul %212, %210, %cst_97 {dimension_numbers = #tpu.dot_dimension_numbers<[1], [0], [0], [1], [0, 0, 1, 1], [], []>} : vector<4x8xf32>, vector<8x128xf32>, vector<4x128xf32> -> vector<4x128xf32>
    %c1_98 = arith.constant 1 : index
    %c0_99 = arith.constant 0 : index
    %c0_100 = arith.constant 0 : index
    %214 = vector.load %arg5[%c1_98, %c0_99, %c0_100] : memref<3x4x1xf32, #tpu.memory_space<vmem>>, vector<1x4x1xf32>
    %215 = vector.shape_cast %214 : vector<1x4x1xf32> to vector<4x1xf32>
    %c1_101 = arith.constant 1 : index
    %c0_102 = arith.constant 0 : index
    %c0_103 = arith.constant 0 : index
    %216 = vector.load %arg6[%c1_101, %c0_102, %c0_103] : memref<3x4x1xf32, #tpu.memory_space<vmem>>, vector<1x4x1xf32>
    %217 = vector.shape_cast %216 : vector<1x4x1xf32> to vector<4x1xf32>
    %cst_104 = arith.constant 0.000000e+00 : f32
    %218 = vector.shape_cast %2 : vector<1x128xi1> to vector<1x128xi1>
    %219 = vector.broadcast %218 : vector<1x128xi1> to vector<4x128xi1>
    %220 = vector.broadcast %cst_104 : f32 to vector<4x128xf32>
    %221 = arith.select %219, %213, %220 : vector<4x128xi1>, vector<4x128xf32>
    %cst_105 = arith.constant dense<0.000000e+00> : vector<4xf32>
    %222 = vector.multi_reduction <add>, %221, %cst_105 [1] : vector<4x128xf32> to vector<4xf32>
    %223 = vector.shape_cast %222 : vector<4xf32> to vector<4x1xf32>
    %cst_106 = arith.constant 6.250000e-02 : f32
    %224 = vector.broadcast %cst_106 : f32 to vector<4x1xf32>
    %225 = arith.mulf %223, %224 : vector<4x1xf32>
    %226 = arith.mulf %221, %221 : vector<4x128xf32>
    %cst_107 = arith.constant dense<0.000000e+00> : vector<4xf32>
    %227 = vector.multi_reduction <add>, %226, %cst_107 [1] : vector<4x128xf32> to vector<4xf32>
    %228 = vector.shape_cast %227 : vector<4xf32> to vector<4x1xf32>
    %cst_108 = arith.constant 6.250000e-02 : f32
    %229 = vector.broadcast %cst_108 : f32 to vector<4x1xf32>
    %230 = arith.mulf %228, %229 : vector<4x1xf32>
    %231 = arith.mulf %225, %225 : vector<4x1xf32>
    %232 = arith.subf %230, %231 : vector<4x1xf32>
    %cst_109 = arith.constant 9.99999974E-6 : f32
    %233 = vector.broadcast %cst_109 : f32 to vector<4x1xf32>
    %234 = arith.addf %232, %233 : vector<4x1xf32>
    %235 = math.rsqrt %234 : vector<4x1xf32>
    %236 = arith.mulf %215, %235 : vector<4x1xf32>
    %237 = arith.mulf %225, %236 : vector<4x1xf32>
    %238 = arith.subf %217, %237 : vector<4x1xf32>
    %239 = vector.broadcast %236 : vector<4x1xf32> to vector<4x128xf32>
    %240 = arith.mulf %213, %239 : vector<4x128xf32>
    %241 = vector.broadcast %238 : vector<4x1xf32> to vector<4x128xf32>
    %242 = arith.addf %240, %241 : vector<4x128xf32>
    %cst_110 = arith.constant 0.000000e+00 : f32
    %243 = vector.broadcast %cst_110 : f32 to vector<4x128xf32>
    %244 = arith.maximumf %242, %243 : vector<4x128xf32>
    %c2_i32_111 = arith.constant 2 : i32
    %245 = tpu.dynamic_rotate %244 by %c2_i32_111 dim 1 : vector<4x128xf32>, i32 -> vector<4x128xf32>
    %cst_112 = arith.constant 0.000000e+00 : f32
    %246 = vector.shape_cast %20 : vector<1x128xi1> to vector<1x128xi1>
    %247 = vector.broadcast %246 : vector<1x128xi1> to vector<4x128xi1>
    %248 = vector.broadcast %cst_112 : f32 to vector<4x128xf32>
    %249 = arith.select %247, %245, %248 : vector<4x128xi1>, vector<4x128xf32>
    %c1_113 = arith.constant 1 : index
    %c0_114 = arith.constant 0 : index
    %c0_115 = arith.constant 0 : index
    %c0_116 = arith.constant 0 : index
    %250 = vector.load %arg7[%c1_113, %c0_114, %c0_115, %c0_116] : memref<3x3x4x4xf32, #tpu.memory_space<vmem>>, vector<1x1x4x4xf32>
    %251 = vector.shape_cast %250 : vector<1x1x4x4xf32> to vector<4x4xf32>
    %cst_117 = arith.constant dense<0.000000e+00> : vector<4x128xf32>
    %252 = tpu.matmul %251, %249, %cst_117 {dimension_numbers = #tpu.dot_dimension_numbers<[1], [0], [0], [1], [0, 0, 1, 1], [], []>} : vector<4x4xf32>, vector<4x128xf32>, vector<4x128xf32> -> vector<4x128xf32>
    %c1_118 = arith.constant 1 : index
    %c1_119 = arith.constant 1 : index
    %c0_120 = arith.constant 0 : index
    %c0_121 = arith.constant 0 : index
    %253 = vector.load %arg7[%c1_118, %c1_119, %c0_120, %c0_121] : memref<3x3x4x4xf32, #tpu.memory_space<vmem>>, vector<1x1x4x4xf32>
    %254 = vector.shape_cast %253 : vector<1x1x4x4xf32> to vector<4x4xf32>
    %cst_122 = arith.constant dense<0.000000e+00> : vector<4x128xf32>
    %255 = tpu.matmul %254, %244, %cst_122 {dimension_numbers = #tpu.dot_dimension_numbers<[1], [0], [0], [1], [0, 0, 1, 1], [], []>} : vector<4x4xf32>, vector<4x128xf32>, vector<4x128xf32> -> vector<4x128xf32>
    %256 = arith.addf %252, %255 : vector<4x128xf32>
    %c126_i32 = arith.constant 126 : i32
    %257 = tpu.dynamic_rotate %244 by %c126_i32 dim 1 : vector<4x128xf32>, i32 -> vector<4x128xf32>
    %cst_123 = arith.constant 0.000000e+00 : f32
    %258 = vector.shape_cast %47 : vector<1x128xi1> to vector<1x128xi1>
    %259 = vector.broadcast %258 : vector<1x128xi1> to vector<4x128xi1>
    %260 = vector.broadcast %cst_123 : f32 to vector<4x128xf32>
    %261 = arith.select %259, %257, %260 : vector<4x128xi1>, vector<4x128xf32>
    %c1_124 = arith.constant 1 : index
    %c2_125 = arith.constant 2 : index
    %c0_126 = arith.constant 0 : index
    %c0_127 = arith.constant 0 : index
    %262 = vector.load %arg7[%c1_124, %c2_125, %c0_126, %c0_127] : memref<3x3x4x4xf32, #tpu.memory_space<vmem>>, vector<1x1x4x4xf32>
    %263 = vector.shape_cast %262 : vector<1x1x4x4xf32> to vector<4x4xf32>
    %cst_128 = arith.constant dense<0.000000e+00> : vector<4x128xf32>
    %264 = tpu.matmul %263, %261, %cst_128 {dimension_numbers = #tpu.dot_dimension_numbers<[1], [0], [0], [1], [0, 0, 1, 1], [], []>} : vector<4x4xf32>, vector<4x128xf32>, vector<4x128xf32> -> vector<4x128xf32>
    %265 = arith.addf %256, %264 : vector<4x128xf32>
    %c1_129 = arith.constant 1 : index
    %c0_130 = arith.constant 0 : index
    %c0_131 = arith.constant 0 : index
    %266 = vector.load %arg8[%c1_129, %c0_130, %c0_131] : memref<3x4x1xf32, #tpu.memory_space<vmem>>, vector<1x4x1xf32>
    %267 = vector.shape_cast %266 : vector<1x4x1xf32> to vector<4x1xf32>
    %c1_132 = arith.constant 1 : index
    %c0_133 = arith.constant 0 : index
    %c0_134 = arith.constant 0 : index
    %268 = vector.load %arg9[%c1_132, %c0_133, %c0_134] : memref<3x4x1xf32, #tpu.memory_space<vmem>>, vector<1x4x1xf32>
    %269 = vector.shape_cast %268 : vector<1x4x1xf32> to vector<4x1xf32>
    %cst_135 = arith.constant 0.000000e+00 : f32
    %270 = vector.shape_cast %2 : vector<1x128xi1> to vector<1x128xi1>
    %271 = vector.broadcast %270 : vector<1x128xi1> to vector<4x128xi1>
    %272 = vector.broadcast %cst_135 : f32 to vector<4x128xf32>
    %273 = arith.select %271, %265, %272 : vector<4x128xi1>, vector<4x128xf32>
    %cst_136 = arith.constant dense<0.000000e+00> : vector<4xf32>
    %274 = vector.multi_reduction <add>, %273, %cst_136 [1] : vector<4x128xf32> to vector<4xf32>
    %275 = vector.shape_cast %274 : vector<4xf32> to vector<4x1xf32>
    %cst_137 = arith.constant 6.250000e-02 : f32
    %276 = vector.broadcast %cst_137 : f32 to vector<4x1xf32>
    %277 = arith.mulf %275, %276 : vector<4x1xf32>
    %278 = arith.mulf %273, %273 : vector<4x128xf32>
    %cst_138 = arith.constant dense<0.000000e+00> : vector<4xf32>
    %279 = vector.multi_reduction <add>, %278, %cst_138 [1] : vector<4x128xf32> to vector<4xf32>
    %280 = vector.shape_cast %279 : vector<4xf32> to vector<4x1xf32>
    %cst_139 = arith.constant 6.250000e-02 : f32
    %281 = vector.broadcast %cst_139 : f32 to vector<4x1xf32>
    %282 = arith.mulf %280, %281 : vector<4x1xf32>
    %283 = arith.mulf %277, %277 : vector<4x1xf32>
    %284 = arith.subf %282, %283 : vector<4x1xf32>
    %cst_140 = arith.constant 9.99999974E-6 : f32
    %285 = vector.broadcast %cst_140 : f32 to vector<4x1xf32>
    %286 = arith.addf %284, %285 : vector<4x1xf32>
    %287 = math.rsqrt %286 : vector<4x1xf32>
    %288 = arith.mulf %267, %287 : vector<4x1xf32>
    %289 = arith.mulf %277, %288 : vector<4x1xf32>
    %290 = arith.subf %269, %289 : vector<4x1xf32>
    %291 = vector.broadcast %288 : vector<4x1xf32> to vector<4x128xf32>
    %292 = arith.mulf %265, %291 : vector<4x128xf32>
    %293 = vector.broadcast %290 : vector<4x1xf32> to vector<4x128xf32>
    %294 = arith.addf %292, %293 : vector<4x128xf32>
    %cst_141 = arith.constant 0.000000e+00 : f32
    %295 = vector.broadcast %cst_141 : f32 to vector<4x128xf32>
    %296 = arith.maximumf %294, %295 : vector<4x128xf32>
    %c1_142 = arith.constant 1 : index
    %c0_143 = arith.constant 0 : index
    %c0_144 = arith.constant 0 : index
    %297 = vector.load %arg10[%c1_142, %c0_143, %c0_144] : memref<3x8x4xf32, #tpu.memory_space<vmem>>, vector<1x8x4xf32>
    %298 = vector.shape_cast %297 : vector<1x8x4xf32> to vector<8x4xf32>
    %cst_145 = arith.constant dense<0.000000e+00> : vector<8x128xf32>
    %299 = tpu.matmul %298, %296, %cst_145 {dimension_numbers = #tpu.dot_dimension_numbers<[1], [0], [0], [1], [0, 0, 1, 1], [], []>} : vector<8x4xf32>, vector<4x128xf32>, vector<8x128xf32> -> vector<8x128xf32>
    %300 = arith.addf %179, %299 : vector<8x128xf32>
    %c2_146 = arith.constant 2 : index
    %c0_147 = arith.constant 0 : index
    %c0_148 = arith.constant 0 : index
    %301 = vector.load %arg2[%c2_146, %c0_147, %c0_148] : memref<3x8x1xf32, #tpu.memory_space<vmem>>, vector<1x8x1xf32>
    %302 = vector.shape_cast %301 : vector<1x8x1xf32> to vector<8x1xf32>
    %c2_149 = arith.constant 2 : index
    %c0_150 = arith.constant 0 : index
    %c0_151 = arith.constant 0 : index
    %303 = vector.load %arg3[%c2_149, %c0_150, %c0_151] : memref<3x8x1xf32, #tpu.memory_space<vmem>>, vector<1x8x1xf32>
    %304 = vector.shape_cast %303 : vector<1x8x1xf32> to vector<8x1xf32>
    %cst_152 = arith.constant 0.000000e+00 : f32
    %305 = vector.shape_cast %2 : vector<1x128xi1> to vector<1x128xi1>
    %306 = vector.broadcast %305 : vector<1x128xi1> to vector<8x128xi1>
    %307 = vector.broadcast %cst_152 : f32 to vector<8x128xf32>
    %308 = arith.select %306, %300, %307 : vector<8x128xi1>, vector<8x128xf32>
    %cst_153 = arith.constant dense<0.000000e+00> : vector<8xf32>
    %309 = vector.multi_reduction <add>, %308, %cst_153 [1] : vector<8x128xf32> to vector<8xf32>
    %310 = vector.shape_cast %309 : vector<8xf32> to vector<8x1xf32>
    %cst_154 = arith.constant 6.250000e-02 : f32
    %311 = vector.broadcast %cst_154 : f32 to vector<8x1xf32>
    %312 = arith.mulf %310, %311 : vector<8x1xf32>
    %313 = arith.mulf %308, %308 : vector<8x128xf32>
    %cst_155 = arith.constant dense<0.000000e+00> : vector<8xf32>
    %314 = vector.multi_reduction <add>, %313, %cst_155 [1] : vector<8x128xf32> to vector<8xf32>
    %315 = vector.shape_cast %314 : vector<8xf32> to vector<8x1xf32>
    %cst_156 = arith.constant 6.250000e-02 : f32
    %316 = vector.broadcast %cst_156 : f32 to vector<8x1xf32>
    %317 = arith.mulf %315, %316 : vector<8x1xf32>
    %318 = arith.mulf %312, %312 : vector<8x1xf32>
    %319 = arith.subf %317, %318 : vector<8x1xf32>
    %cst_157 = arith.constant 9.99999974E-6 : f32
    %320 = vector.broadcast %cst_157 : f32 to vector<8x1xf32>
    %321 = arith.addf %319, %320 : vector<8x1xf32>
    %322 = math.rsqrt %321 : vector<8x1xf32>
    %323 = arith.mulf %302, %322 : vector<8x1xf32>
    %324 = arith.mulf %312, %323 : vector<8x1xf32>
    %325 = arith.subf %304, %324 : vector<8x1xf32>
    %326 = vector.broadcast %323 : vector<8x1xf32> to vector<8x128xf32>
    %327 = arith.mulf %300, %326 : vector<8x128xf32>
    %328 = vector.broadcast %325 : vector<8x1xf32> to vector<8x128xf32>
    %329 = arith.addf %327, %328 : vector<8x128xf32>
    %cst_158 = arith.constant 0.000000e+00 : f32
    %330 = vector.broadcast %cst_158 : f32 to vector<8x128xf32>
    %331 = arith.maximumf %329, %330 : vector<8x128xf32>
    %c2_159 = arith.constant 2 : index
    %c0_160 = arith.constant 0 : index
    %c0_161 = arith.constant 0 : index
    %332 = vector.load %arg4[%c2_159, %c0_160, %c0_161] : memref<3x4x8xf32, #tpu.memory_space<vmem>>, vector<1x4x8xf32>
    %333 = vector.shape_cast %332 : vector<1x4x8xf32> to vector<4x8xf32>
    %cst_162 = arith.constant dense<0.000000e+00> : vector<4x128xf32>
    %334 = tpu.matmul %333, %331, %cst_162 {dimension_numbers = #tpu.dot_dimension_numbers<[1], [0], [0], [1], [0, 0, 1, 1], [], []>} : vector<4x8xf32>, vector<8x128xf32>, vector<4x128xf32> -> vector<4x128xf32>
    %c2_163 = arith.constant 2 : index
    %c0_164 = arith.constant 0 : index
    %c0_165 = arith.constant 0 : index
    %335 = vector.load %arg5[%c2_163, %c0_164, %c0_165] : memref<3x4x1xf32, #tpu.memory_space<vmem>>, vector<1x4x1xf32>
    %336 = vector.shape_cast %335 : vector<1x4x1xf32> to vector<4x1xf32>
    %c2_166 = arith.constant 2 : index
    %c0_167 = arith.constant 0 : index
    %c0_168 = arith.constant 0 : index
    %337 = vector.load %arg6[%c2_166, %c0_167, %c0_168] : memref<3x4x1xf32, #tpu.memory_space<vmem>>, vector<1x4x1xf32>
    %338 = vector.shape_cast %337 : vector<1x4x1xf32> to vector<4x1xf32>
    %cst_169 = arith.constant 0.000000e+00 : f32
    %339 = vector.shape_cast %2 : vector<1x128xi1> to vector<1x128xi1>
    %340 = vector.broadcast %339 : vector<1x128xi1> to vector<4x128xi1>
    %341 = vector.broadcast %cst_169 : f32 to vector<4x128xf32>
    %342 = arith.select %340, %334, %341 : vector<4x128xi1>, vector<4x128xf32>
    %cst_170 = arith.constant dense<0.000000e+00> : vector<4xf32>
    %343 = vector.multi_reduction <add>, %342, %cst_170 [1] : vector<4x128xf32> to vector<4xf32>
    %344 = vector.shape_cast %343 : vector<4xf32> to vector<4x1xf32>
    %cst_171 = arith.constant 6.250000e-02 : f32
    %345 = vector.broadcast %cst_171 : f32 to vector<4x1xf32>
    %346 = arith.mulf %344, %345 : vector<4x1xf32>
    %347 = arith.mulf %342, %342 : vector<4x128xf32>
    %cst_172 = arith.constant dense<0.000000e+00> : vector<4xf32>
    %348 = vector.multi_reduction <add>, %347, %cst_172 [1] : vector<4x128xf32> to vector<4xf32>
    %349 = vector.shape_cast %348 : vector<4xf32> to vector<4x1xf32>
    %cst_173 = arith.constant 6.250000e-02 : f32
    %350 = vector.broadcast %cst_173 : f32 to vector<4x1xf32>
    %351 = arith.mulf %349, %350 : vector<4x1xf32>
    %352 = arith.mulf %346, %346 : vector<4x1xf32>
    %353 = arith.subf %351, %352 : vector<4x1xf32>
    %cst_174 = arith.constant 9.99999974E-6 : f32
    %354 = vector.broadcast %cst_174 : f32 to vector<4x1xf32>
    %355 = arith.addf %353, %354 : vector<4x1xf32>
    %356 = math.rsqrt %355 : vector<4x1xf32>
    %357 = arith.mulf %336, %356 : vector<4x1xf32>
    %358 = arith.mulf %346, %357 : vector<4x1xf32>
    %359 = arith.subf %338, %358 : vector<4x1xf32>
    %360 = vector.broadcast %357 : vector<4x1xf32> to vector<4x128xf32>
    %361 = arith.mulf %334, %360 : vector<4x128xf32>
    %362 = vector.broadcast %359 : vector<4x1xf32> to vector<4x128xf32>
    %363 = arith.addf %361, %362 : vector<4x128xf32>
    %cst_175 = arith.constant 0.000000e+00 : f32
    %364 = vector.broadcast %cst_175 : f32 to vector<4x128xf32>
    %365 = arith.maximumf %363, %364 : vector<4x128xf32>
    %c4_i32_176 = arith.constant 4 : i32
    %366 = tpu.dynamic_rotate %365 by %c4_i32_176 dim 1 : vector<4x128xf32>, i32 -> vector<4x128xf32>
    %cst_177 = arith.constant 0.000000e+00 : f32
    %367 = vector.shape_cast %11 : vector<1x128xi1> to vector<1x128xi1>
    %368 = vector.broadcast %367 : vector<1x128xi1> to vector<4x128xi1>
    %369 = vector.broadcast %cst_177 : f32 to vector<4x128xf32>
    %370 = arith.select %368, %366, %369 : vector<4x128xi1>, vector<4x128xf32>
    %c2_178 = arith.constant 2 : index
    %c0_179 = arith.constant 0 : index
    %c0_180 = arith.constant 0 : index
    %c0_181 = arith.constant 0 : index
    %371 = vector.load %arg7[%c2_178, %c0_179, %c0_180, %c0_181] : memref<3x3x4x4xf32, #tpu.memory_space<vmem>>, vector<1x1x4x4xf32>
    %372 = vector.shape_cast %371 : vector<1x1x4x4xf32> to vector<4x4xf32>
    %cst_182 = arith.constant dense<0.000000e+00> : vector<4x128xf32>
    %373 = tpu.matmul %372, %370, %cst_182 {dimension_numbers = #tpu.dot_dimension_numbers<[1], [0], [0], [1], [0, 0, 1, 1], [], []>} : vector<4x4xf32>, vector<4x128xf32>, vector<4x128xf32> -> vector<4x128xf32>
    %c2_183 = arith.constant 2 : index
    %c1_184 = arith.constant 1 : index
    %c0_185 = arith.constant 0 : index
    %c0_186 = arith.constant 0 : index
    %374 = vector.load %arg7[%c2_183, %c1_184, %c0_185, %c0_186] : memref<3x3x4x4xf32, #tpu.memory_space<vmem>>, vector<1x1x4x4xf32>
    %375 = vector.shape_cast %374 : vector<1x1x4x4xf32> to vector<4x4xf32>
    %cst_187 = arith.constant dense<0.000000e+00> : vector<4x128xf32>
    %376 = tpu.matmul %375, %365, %cst_187 {dimension_numbers = #tpu.dot_dimension_numbers<[1], [0], [0], [1], [0, 0, 1, 1], [], []>} : vector<4x4xf32>, vector<4x128xf32>, vector<4x128xf32> -> vector<4x128xf32>
    %377 = arith.addf %373, %376 : vector<4x128xf32>
    %c124_i32 = arith.constant 124 : i32
    %378 = tpu.dynamic_rotate %365 by %c124_i32 dim 1 : vector<4x128xf32>, i32 -> vector<4x128xf32>
    %cst_188 = arith.constant 0.000000e+00 : f32
    %379 = vector.shape_cast %56 : vector<1x128xi1> to vector<1x128xi1>
    %380 = vector.broadcast %379 : vector<1x128xi1> to vector<4x128xi1>
    %381 = vector.broadcast %cst_188 : f32 to vector<4x128xf32>
    %382 = arith.select %380, %378, %381 : vector<4x128xi1>, vector<4x128xf32>
    %c2_189 = arith.constant 2 : index
    %c2_190 = arith.constant 2 : index
    %c0_191 = arith.constant 0 : index
    %c0_192 = arith.constant 0 : index
    %383 = vector.load %arg7[%c2_189, %c2_190, %c0_191, %c0_192] : memref<3x3x4x4xf32, #tpu.memory_space<vmem>>, vector<1x1x4x4xf32>
    %384 = vector.shape_cast %383 : vector<1x1x4x4xf32> to vector<4x4xf32>
    %cst_193 = arith.constant dense<0.000000e+00> : vector<4x128xf32>
    %385 = tpu.matmul %384, %382, %cst_193 {dimension_numbers = #tpu.dot_dimension_numbers<[1], [0], [0], [1], [0, 0, 1, 1], [], []>} : vector<4x4xf32>, vector<4x128xf32>, vector<4x128xf32> -> vector<4x128xf32>
    %386 = arith.addf %377, %385 : vector<4x128xf32>
    %c2_194 = arith.constant 2 : index
    %c0_195 = arith.constant 0 : index
    %c0_196 = arith.constant 0 : index
    %387 = vector.load %arg8[%c2_194, %c0_195, %c0_196] : memref<3x4x1xf32, #tpu.memory_space<vmem>>, vector<1x4x1xf32>
    %388 = vector.shape_cast %387 : vector<1x4x1xf32> to vector<4x1xf32>
    %c2_197 = arith.constant 2 : index
    %c0_198 = arith.constant 0 : index
    %c0_199 = arith.constant 0 : index
    %389 = vector.load %arg9[%c2_197, %c0_198, %c0_199] : memref<3x4x1xf32, #tpu.memory_space<vmem>>, vector<1x4x1xf32>
    %390 = vector.shape_cast %389 : vector<1x4x1xf32> to vector<4x1xf32>
    %cst_200 = arith.constant 0.000000e+00 : f32
    %391 = vector.shape_cast %2 : vector<1x128xi1> to vector<1x128xi1>
    %392 = vector.broadcast %391 : vector<1x128xi1> to vector<4x128xi1>
    %393 = vector.broadcast %cst_200 : f32 to vector<4x128xf32>
    %394 = arith.select %392, %386, %393 : vector<4x128xi1>, vector<4x128xf32>
    %cst_201 = arith.constant dense<0.000000e+00> : vector<4xf32>
    %395 = vector.multi_reduction <add>, %394, %cst_201 [1] : vector<4x128xf32> to vector<4xf32>
    %396 = vector.shape_cast %395 : vector<4xf32> to vector<4x1xf32>
    %cst_202 = arith.constant 6.250000e-02 : f32
    %397 = vector.broadcast %cst_202 : f32 to vector<4x1xf32>
    %398 = arith.mulf %396, %397 : vector<4x1xf32>
    %399 = arith.mulf %394, %394 : vector<4x128xf32>
    %cst_203 = arith.constant dense<0.000000e+00> : vector<4xf32>
    %400 = vector.multi_reduction <add>, %399, %cst_203 [1] : vector<4x128xf32> to vector<4xf32>
    %401 = vector.shape_cast %400 : vector<4xf32> to vector<4x1xf32>
    %cst_204 = arith.constant 6.250000e-02 : f32
    %402 = vector.broadcast %cst_204 : f32 to vector<4x1xf32>
    %403 = arith.mulf %401, %402 : vector<4x1xf32>
    %404 = arith.mulf %398, %398 : vector<4x1xf32>
    %405 = arith.subf %403, %404 : vector<4x1xf32>
    %cst_205 = arith.constant 9.99999974E-6 : f32
    %406 = vector.broadcast %cst_205 : f32 to vector<4x1xf32>
    %407 = arith.addf %405, %406 : vector<4x1xf32>
    %408 = math.rsqrt %407 : vector<4x1xf32>
    %409 = arith.mulf %388, %408 : vector<4x1xf32>
    %410 = arith.mulf %398, %409 : vector<4x1xf32>
    %411 = arith.subf %390, %410 : vector<4x1xf32>
    %412 = vector.broadcast %409 : vector<4x1xf32> to vector<4x128xf32>
    %413 = arith.mulf %386, %412 : vector<4x128xf32>
    %414 = vector.broadcast %411 : vector<4x1xf32> to vector<4x128xf32>
    %415 = arith.addf %413, %414 : vector<4x128xf32>
    %cst_206 = arith.constant 0.000000e+00 : f32
    %416 = vector.broadcast %cst_206 : f32 to vector<4x128xf32>
    %417 = arith.maximumf %415, %416 : vector<4x128xf32>
    %c2_207 = arith.constant 2 : index
    %c0_208 = arith.constant 0 : index
    %c0_209 = arith.constant 0 : index
    %418 = vector.load %arg10[%c2_207, %c0_208, %c0_209] : memref<3x8x4xf32, #tpu.memory_space<vmem>>, vector<1x8x4xf32>
    %419 = vector.shape_cast %418 : vector<1x8x4xf32> to vector<8x4xf32>
    %cst_210 = arith.constant dense<0.000000e+00> : vector<8x128xf32>
    %420 = tpu.matmul %419, %417, %cst_210 {dimension_numbers = #tpu.dot_dimension_numbers<[1], [0], [0], [1], [0, 0, 1, 1], [], []>} : vector<8x4xf32>, vector<4x128xf32>, vector<8x128xf32> -> vector<8x128xf32>
    %421 = arith.addf %300, %420 : vector<8x128xf32>
    %c0_211 = arith.constant 0 : index
    %c0_212 = arith.constant 0 : index
    %c0_213 = arith.constant 0 : index
    %422 = vector.load %arg11[%c0_211, %c0_212, %c0_213] : memref<1x8x128xf32, #tpu.memory_space<vmem>>, vector<1x8x128xf32>
    %423 = vector.shape_cast %422 : vector<1x8x128xf32> to vector<8x128xf32>
    %424 = vector.shape_cast %421 : vector<8x128xf32> to vector<1x8x128xf32>
    tpu.vector_store %arg11[%c0_211, %c0_212, %c0_213], %424 {strides = array<i32>} : memref<1x8x128xf32, #tpu.memory_space<vmem>>, vector<1x8x128xf32>,
    return
  }
  func.func @transform_0(%arg0: i32) -> (i32, i32, i32) {
    %c0_i32 = arith.constant 0 : i32
    %c0_i32_0 = arith.constant 0 : i32
    %c0_i32_1 = arith.constant 0 : i32
    return %arg0, %c0_i32, %c0_i32_0 : i32, i32, i32
  }
  func.func @transform_1(%arg0: i32) -> (i32, i32, i32) {
    %c0_i32 = arith.constant 0 : i32
    %c0_i32_0 = arith.constant 0 : i32
    %c0_i32_1 = arith.constant 0 : i32
    %c0_i32_2 = arith.constant 0 : i32
    return %c0_i32, %c0_i32_0, %c0_i32_1 : i32, i32, i32
  }
  func.func @transform_2(%arg0: i32) -> (i32, i32, i32) {
    %c0_i32 = arith.constant 0 : i32
    %c0_i32_0 = arith.constant 0 : i32
    %c0_i32_1 = arith.constant 0 : i32
    %c0_i32_2 = arith.constant 0 : i32
    return %c0_i32, %c0_i32_0, %c0_i32_1 : i32, i32, i32
  }
  func.func @transform_3(%arg0: i32) -> (i32, i32, i32) {
    %c0_i32 = arith.constant 0 : i32
    %c0_i32_0 = arith.constant 0 : i32
    %c0_i32_1 = arith.constant 0 : i32
    %c0_i32_2 = arith.constant 0 : i32
    return %c0_i32, %c0_i32_0, %c0_i32_1 : i32, i32, i32
  }
  func.func @transform_4(%arg0: i32) -> (i32, i32, i32) {
    %c0_i32 = arith.constant 0 : i32
    %c0_i32_0 = arith.constant 0 : i32
    %c0_i32_1 = arith.constant 0 : i32
    %c0_i32_2 = arith.constant 0 : i32
    return %c0_i32, %c0_i32_0, %c0_i32_1 : i32, i32, i32
  }
  func.func @transform_5(%arg0: i32) -> (i32, i32, i32) {
    %c0_i32 = arith.constant 0 : i32
    %c0_i32_0 = arith.constant 0 : i32
    %c0_i32_1 = arith.constant 0 : i32
    %c0_i32_2 = arith.constant 0 : i32
    return %c0_i32, %c0_i32_0, %c0_i32_1 : i32, i32, i32
  }
  func.func @transform_6(%arg0: i32) -> (i32, i32, i32, i32) {
    %c0_i32 = arith.constant 0 : i32
    %c0_i32_0 = arith.constant 0 : i32
    %c0_i32_1 = arith.constant 0 : i32
    %c0_i32_2 = arith.constant 0 : i32
    %c0_i32_3 = arith.constant 0 : i32
    return %c0_i32, %c0_i32_0, %c0_i32_1, %c0_i32_2 : i32, i32, i32, i32
  }
  func.func @transform_7(%arg0: i32) -> (i32, i32, i32) {
    %c0_i32 = arith.constant 0 : i32
    %c0_i32_0 = arith.constant 0 : i32
    %c0_i32_1 = arith.constant 0 : i32
    %c0_i32_2 = arith.constant 0 : i32
    return %c0_i32, %c0_i32_0, %c0_i32_1 : i32, i32, i32
  }
  func.func @transform_8(%arg0: i32) -> (i32, i32, i32) {
    %c0_i32 = arith.constant 0 : i32
    %c0_i32_0 = arith.constant 0 : i32
    %c0_i32_1 = arith.constant 0 : i32
    %c0_i32_2 = arith.constant 0 : i32
    return %c0_i32, %c0_i32_0, %c0_i32_1 : i32, i32, i32
  }
  func.func @transform_9(%arg0: i32) -> (i32, i32, i32) {
    %c0_i32 = arith.constant 0 : i32
    %c0_i32_0 = arith.constant 0 : i32
    %c0_i32_1 = arith.constant 0 : i32
    %c0_i32_2 = arith.constant 0 : i32
    return %c0_i32, %c0_i32_0, %c0_i32_1 : i32, i32, i32
  }
  func.func @transform_10(%arg0: i32) -> (i32, i32, i32) {
    %c0_i32 = arith.constant 0 : i32
    %c0_i32_0 = arith.constant 0 : i32
    %c0_i32_1 = arith.constant 0 : i32
    return %arg0, %c0_i32, %c0_i32_0 : i32, i32, i32
  }
}

</mosaic_0001>

<llo_original>
// kernel: tpu_custom_call.1
$region0: #{tpu_custom_call.1}
  #allocation0 [shape = 'u32[]', space=smem, size = 0x4, offset = 0x4, fixed_abs, tag = 'smem constant byte address 0x4 - core index']
  #allocation1 [shape = 'u32[144,128]{1,0:T(1,128)}', space=vmem, size = 0x12000, scoped, tag = 'internal scratch']
  %s0 = inlined_call_operand.vmem [shape: f32[2,8,128], index: 0, kind: input, shape index: {}]
  %s1 = inlined_call_operand.vmem [shape: f32[3,8,1], index: 1, kind: input, shape index: {}]
  %s2 = inlined_call_operand.vmem [shape: f32[3,8,1], index: 2, kind: input, shape index: {}]
  %s3 = inlined_call_operand.vmem [shape: f32[3,4,8], index: 3, kind: input, shape index: {}]
  %s4 = inlined_call_operand.vmem [shape: f32[3,4,1], index: 4, kind: input, shape index: {}]
  %s5 = inlined_call_operand.vmem [shape: f32[3,4,1], index: 5, kind: input, shape index: {}]
  %s6 = inlined_call_operand.vmem [shape: f32[3,3,4,4], index: 6, kind: input, shape index: {}]
  %s7 = inlined_call_operand.vmem [shape: f32[3,4,1], index: 7, kind: input, shape index: {}]
  %s8 = inlined_call_operand.vmem [shape: f32[3,4,1], index: 8, kind: input, shape index: {}]
  %s9 = inlined_call_operand.vmem [shape: f32[3,8,4], index: 9, kind: input, shape index: {}]
  %s10 = inlined_call_operand.hbm [shape: f32[2,8,128], index: 10, kind: output, shape index: {}]
  %s11 = sld [smem:[#allocation0]]
  $region73: #{tpu_custom_call.1} parent=0
    _
  %s13 = ssub.s32 1, %s11
  %s14 = scalar_select 0, %s13, %s11
  $region1: #{tpu_custom_call.1} parent=0
    #allocation2 [shape = 'u8[8192]{0}', space=vmem, size = 0x2000, scoped, tag = 'output window, operand 0']
    #allocation3 [shape = 's32[2]{0}', space=sflag, size = 0x8, scoped, tag = 'scoped memory for tpu_custom_call.1']
    %15 = vsyncpa [#allocation3], 0
    %s16 = scalar_lea.sflag [#allocation3], 1
    %17 = vsyncpa %s16, 0
    loop: start=0, step=1, limit=4
    $region2: #{tpu_custom_call.1} parent=1 // loop_pre_header
      _
    $region3: #{tpu_custom_call.1} parent=1 // loop_header
      %s19 = sphi 0, %s23
      %p20 = scmp.ge.s32.totalorder %s19, 4
      %s29 = sphi 0, %s31
      %s32 = sphi 0, %s29
      %s33 = sphi 0, %s32
      %s49 = sphi 0, %s33
      %s53 = sphi 0, %s53
      %s55 = sphi 0, %s53
      %s56 = sphi 0, %s55
      %s70 = sphi 0, %s56
      %s74 = sphi 0, %s74
      %s76 = sphi 0, %s74
      %s77 = sphi 0, %s76
      %s91 = sphi 0, %s77
      %s95 = sphi 0, %s95
      %s97 = sphi 0, %s95
      %s98 = sphi 0, %s97
      %s112 = sphi 0, %s98
      %s116 = sphi 0, %s116
      %s118 = sphi 0, %s116
      %s119 = sphi 0, %s118
      %s133 = sphi 0, %s119
      %s137 = sphi 0, %s137
      %s139 = sphi 0, %s137
      %s140 = sphi 0, %s139
      %s154 = sphi 0, %s140
      %s158 = sphi 0, %s158
      %s160 = sphi 0, %s158
      %s161 = sphi 0, %s160
      %s175 = sphi 0, %s161
      %s179 = sphi 0, %s179
      %s181 = sphi 0, %s179
      %s182 = sphi 0, %s181
      %s196 = sphi 0, %s182
      %s200 = sphi 0, %s200
      %s202 = sphi 0, %s200
      %s203 = sphi 0, %s202
      %s217 = sphi 0, %s203
      %s221 = sphi 0, %s221
      %s223 = sphi 0, %s221
      %s224 = sphi 0, %s223
      %s238 = sphi 0, %s224
      %s244 = sphi 0, %s246
      %s247 = sphi 0, %s244
      %s248 = sphi 0, %s247
      %s264 = sphi 0, %s248
    $region4: #{tpu_custom_call.1} parent=1 // loop_header_branch
      %22 = sbr.rel (%p20) target = $region8
    $region5: #{tpu_custom_call.1} parent=1 // loop_body
      %s24 = ssub.s32 %s19, 1
      %s25 = ssub.s32 %s19, 2
      %s26 = sadd.s32 %s19, 1
      %s27 = ssub.s32 %s19, %s26
      %p28 = scmp.eq.s32.totalorder %s27, 0
      %s30 = sadd.s32 %s29, 1
      %s31 = scalar_select %p28, %s29, %s30
      %p34 = pneg %p28
      %p35 = scmp.eq.s32.totalorder %s19, 1
      %p36 = por %p34, %p35
      %p37 = scmp.ne.s32.totalorder %s29, %s32
      %p38 = scmp.eq.s32.totalorder %s19, 0
      %p39 = por %p37, %p38
      %p40 = scmp.ne.s32.totalorder %s29, %s32
      %p41 = scmp.eq.s32.totalorder %s24, 1
      %p42 = por %p40, %p41
      %p43 = scmp.ne.s32.totalorder %s32, %s33
      %p44 = scmp.eq.s32.totalorder %s24, 0
      %p45 = por %p43, %p44
      %p46 = scmp.ne.s32.totalorder %s32, %s33
      %p47 = scmp.eq.s32.totalorder %s25, 1
      %p48 = por %p46, %p47
      %p50 = scmp.ne.s32.totalorder %s33, %s49
      %p51 = scmp.eq.s32.totalorder %s25, 0
      %p52 = por %p50, %p51
      %s54 = sadd.s32 %s53, 1
      %p57 = scmp.eq.s32.totalorder %s19, 1
      %p58 = scmp.ne.s32.totalorder %s53, %s55
      %p59 = scmp.eq.s32.totalorder %s19, 0
      %p60 = por %p58, %p59
      %p61 = scmp.ne.s32.totalorder %s53, %s55
      %p62 = scmp.eq.s32.totalorder %s24, 1
      %p63 = por %p61, %p62
      %p64 = scmp.ne.s32.totalorder %s55, %s56
      %p65 = scmp.eq.s32.totalorder %s24, 0
      %p66 = por %p64, %p65
      %p67 = scmp.ne.s32.totalorder %s55, %s56
      %p68 = scmp.eq.s32.totalorder %s25, 1
      %p69 = por %p67, %p68
      %p71 = scmp.ne.s32.totalorder %s56, %s70
      %p72 = scmp.eq.s32.totalorder %s25, 0
      %p73 = por %p71, %p72
      %s75 = sadd.s32 %s74, 1
      %p78 = scmp.eq.s32.totalorder %s19, 1
      %p79 = scmp.ne.s32.totalorder %s74, %s76
      %p80 = scmp.eq.s32.totalorder %s19, 0
      %p81 = por %p79, %p80
      %p82 = scmp.ne.s32.totalorder %s74, %s76
      %p83 = scmp.eq.s32.totalorder %s24, 1
      %p84 = por %p82, %p83
      %p85 = scmp.ne.s32.totalorder %s76, %s77
      %p86 = scmp.eq.s32.totalorder %s24, 0
      %p87 = por %p85, %p86
      %p88 = scmp.ne.s32.totalorder %s76, %s77
      %p89 = scmp.eq.s32.totalorder %s25, 1
      %p90 = por %p88, %p89
      %p92 = scmp.ne.s32.totalorder %s77, %s91
      %p93 = scmp.eq.s32.totalorder %s25, 0
      %p94 = por %p92, %p93
      %s96 = sadd.s32 %s95, 1
      %p99 = scmp.eq.s32.totalorder %s19, 1
      %p100 = scmp.ne.s32.totalorder %s95, %s97
      %p101 = scmp.eq.s32.totalorder %s19, 0
      %p102 = por %p100, %p101
      %p103 = scmp.ne.s32.totalorder %s95, %s97
      %p104 = scmp.eq.s32.totalorder %s24, 1
      %p105 = por %p103, %p104
      %p106 = scmp.ne.s32.totalorder %s97, %s98
      %p107 = scmp.eq.s32.totalorder %s24, 0
      %p108 = por %p106, %p107
      %p109 = scmp.ne.s32.totalorder %s97, %s98
      %p110 = scmp.eq.s32.totalorder %s25, 1
      %p111 = por %p109, %p110
      %p113 = scmp.ne.s32.totalorder %s98, %s112
      %p114 = scmp.eq.s32.totalorder %s25, 0
      %p115 = por %p113, %p114
      %s117 = sadd.s32 %s116, 1
      %p120 = scmp.eq.s32.totalorder %s19, 1
      %p121 = scmp.ne.s32.totalorder %s116, %s118
      %p122 = scmp.eq.s32.totalorder %s19, 0
      %p123 = por %p121, %p122
      %p124 = scmp.ne.s32.totalorder %s116, %s118
      %p125 = scmp.eq.s32.totalorder %s24, 1
      %p126 = por %p124, %p125
      %p127 = scmp.ne.s32.totalorder %s118, %s119
      %p128 = scmp.eq.s32.totalorder %s24, 0
      %p129 = por %p127, %p128
      %p130 = scmp.ne.s32.totalorder %s118, %s119
      %p131 = scmp.eq.s32.totalorder %s25, 1
      %p132 = por %p130, %p131
      %p134 = scmp.ne.s32.totalorder %s119, %s133
      %p135 = scmp.eq.s32.totalorder %s25, 0
      %p136 = por %p134, %p135
      %s138 = sadd.s32 %s137, 1
      %p141 = scmp.eq.s32.totalorder %s19, 1
      %p142 = scmp.ne.s32.totalorder %s137, %s139
      %p143 = scmp.eq.s32.totalorder %s19, 0
      %p144 = por %p142, %p143
      %p145 = scmp.ne.s32.totalorder %s137, %s139
      %p146 = scmp.eq.s32.totalorder %s24, 1
      %p147 = por %p145, %p146
      %p148 = scmp.ne.s32.totalorder %s139, %s140
      %p149 = scmp.eq.s32.totalorder %s24, 0
      %p150 = por %p148, %p149
      %p151 = scmp.ne.s32.totalorder %s139, %s140
      %p152 = scmp.eq.s32.totalorder %s25, 1
      %p153 = por %p151, %p152
      %p155 = scmp.ne.s32.totalorder %s140, %s154
      %p156 = scmp.eq.s32.totalorder %s25, 0
      %p157 = por %p155, %p156
      %s159 = sadd.s32 %s158, 1
      %p162 = scmp.eq.s32.totalorder %s19, 1
      %p163 = scmp.ne.s32.totalorder %s158, %s160
      %p164 = scmp.eq.s32.totalorder %s19, 0
      %p165 = por %p163, %p164
      %p166 = scmp.ne.s32.totalorder %s158, %s160
      %p167 = scmp.eq.s32.totalorder %s24, 1
      %p168 = por %p166, %p167
      %p169 = scmp.ne.s32.totalorder %s160, %s161
      %p170 = scmp.eq.s32.totalorder %s24, 0
      %p171 = por %p169, %p170
      %p172 = scmp.ne.s32.totalorder %s160, %s161
      %p173 = scmp.eq.s32.totalorder %s25, 1
      %p174 = por %p172, %p173
      %p176 = scmp.ne.s32.totalorder %s161, %s175
      %p177 = scmp.eq.s32.totalorder %s25, 0
      %p178 = por %p176, %p177
      %s180 = sadd.s32 %s179, 1
      %p183 = scmp.eq.s32.totalorder %s19, 1
      %p184 = scmp.ne.s32.totalorder %s179, %s181
      %p185 = scmp.eq.s32.totalorder %s19, 0
      %p186 = por %p184, %p185
      %p187 = scmp.ne.s32.totalorder %s179, %s181
      %p188 = scmp.eq.s32.totalorder %s24, 1
      %p189 = por %p187, %p188
      %p190 = scmp.ne.s32.totalorder %s181, %s182
      %p191 = scmp.eq.s32.totalorder %s24, 0
      %p192 = por %p190, %p191
      %p193 = scmp.ne.s32.totalorder %s181, %s182
      %p194 = scmp.eq.s32.totalorder %s25, 1
      %p195 = por %p193, %p194
      %p197 = scmp.ne.s32.totalorder %s182, %s196
      %p198 = scmp.eq.s32.totalorder %s25, 0
      %p199 = por %p197, %p198
      %s201 = sadd.s32 %s200, 1
      %p204 = scmp.eq.s32.totalorder %s19, 1
      %p205 = scmp.ne.s32.totalorder %s200, %s202
      %p206 = scmp.eq.s32.totalorder %s19, 0
      %p207 = por %p205, %p206
      %p208 = scmp.ne.s32.totalorder %s200, %s202
      %p209 = scmp.eq.s32.totalorder %s24, 1
      %p210 = por %p208, %p209
      %p211 = scmp.ne.s32.totalorder %s202, %s203
      %p212 = scmp.eq.s32.totalorder %s24, 0
      %p213 = por %p211, %p212
      %p214 = scmp.ne.s32.totalorder %s202, %s203
      %p215 = scmp.eq.s32.totalorder %s25, 1
      %p216 = por %p214, %p215
      %p218 = scmp.ne.s32.totalorder %s203, %s217
      %p219 = scmp.eq.s32.totalorder %s25, 0
      %p220 = por %p218, %p219
      %s222 = sadd.s32 %s221, 1
      %p225 = scmp.eq.s32.totalorder %s19, 1
      %p226 = scmp.ne.s32.totalorder %s221, %s223
      %p227 = scmp.eq.s32.totalorder %s19, 0
      %p228 = por %p226, %p227
      %p229 = scmp.ne.s32.totalorder %s221, %s223
      %p230 = scmp.eq.s32.totalorder %s24, 1
      %p231 = por %p229, %p230
      %p232 = scmp.ne.s32.totalorder %s223, %s224
      %p233 = scmp.eq.s32.totalorder %s24, 0
      %p234 = por %p232, %p233
      %p235 = scmp.ne.s32.totalorder %s223, %s224
      %p236 = scmp.eq.s32.totalorder %s25, 1
      %p237 = por %p235, %p236
      %p239 = scmp.ne.s32.totalorder %s224, %s238
      %p240 = scmp.eq.s32.totalorder %s25, 0
      %p241 = por %p239, %p240
      %s242 = ssub.s32 %s19, %s26
      %p243 = scmp.eq.s32.totalorder %s242, 0
      %s245 = sadd.s32 %s244, 1
      %s246 = scalar_select %p243, %s244, %s245
      %p249 = pneg %p243
      %p250 = scmp.eq.s32.totalorder %s19, 1
      %p251 = por %p249, %p250
      %p252 = scmp.ne.s32.totalorder %s244, %s247
      %p253 = scmp.eq.s32.totalorder %s19, 0
      %p254 = por %p252, %p253
      %p255 = scmp.ne.s32.totalorder %s244, %s247
      %p256 = scmp.eq.s32.totalorder %s24, 1
      %p257 = por %p255, %p256
      %p258 = scmp.ne.s32.totalorder %s247, %s248
      %p259 = scmp.eq.s32.totalorder %s24, 0
      %p260 = por %p258, %p259
      %p261 = scmp.ne.s32.totalorder %s247, %s248
      %p262 = scmp.eq.s32.totalorder %s25, 1
      %p263 = por %p261, %p262
      %p265 = scmp.ne.s32.totalorder %s248, %s264
      %p266 = scmp.eq.s32.totalorder %s25, 0
      %p267 = por %p265, %p266
      %p268 = scmp.le.s32.totalorder 1, %s19
      %p269 = scmp.lt.s32.totalorder %s19, 3
      %p270 = pnand %p268, %p269
      %p271 = pneg %p270
      // Predicated region
      $region9: #{tpu_custom_call.1} parent=5 // pred_check
        _
      $region10: #{tpu_custom_call.1} parent=5 // pred_check_branch
        %273 = sbr.rel (%p270) target = $region12
      $region11: #{tpu_custom_call.1} parent=5 // pred_region
        %s274 = ssub.s32 %s19, 1
        // Predicated region
        $region13: #{tpu_custom_call.1} parent=11 // pred_check
          %p275 = pneg %p66
        $region14: #{tpu_custom_call.1} parent=11 // pred_check_branch
          %277 = sbr.rel (%p275) target = $region16
        $region15: #{tpu_custom_call.1} parent=11 // pred_region
          _
        $region16: #{tpu_custom_call.1} parent=11 // pred_fallthru
          _
        // Predicated region
        $region17: #{tpu_custom_call.1} parent=11 // pred_check
          %p278 = pneg %p87
        $region18: #{tpu_custom_call.1} parent=11 // pred_check_branch
          %280 = sbr.rel (%p278) target = $region20
        $region19: #{tpu_custom_call.1} parent=11 // pred_region
          _
        $region20: #{tpu_custom_call.1} parent=11 // pred_fallthru
          _
        // Predicated region
        $region21: #{tpu_custom_call.1} parent=11 // pred_check
          %p281 = pneg %p108
        $region22: #{tpu_custom_call.1} parent=11 // pred_check_branch
          %283 = sbr.rel (%p281) target = $region24
        $region23: #{tpu_custom_call.1} parent=11 // pred_region
          _
        $region24: #{tpu_custom_call.1} parent=11 // pred_fallthru
          _
        // Predicated region
        $region25: #{tpu_custom_call.1} parent=11 // pred_check
          %p284 = pneg %p129
        $region26: #{tpu_custom_call.1} parent=11 // pred_check_branch
          %286 = sbr.rel (%p284) target = $region28
        $region27: #{tpu_custom_call.1} parent=11 // pred_region
          _
        $region28: #{tpu_custom_call.1} parent=11 // pred_fallthru
          _
        // Predicated region
        $region29: #{tpu_custom_call.1} parent=11 // pred_check
          %p287 = pneg %p150
        $region30: #{tpu_custom_call.1} parent=11 // pred_check_branch
          %289 = sbr.rel (%p287) target = $region32
        $region31: #{tpu_custom_call.1} parent=11 // pred_region
          _
        $region32: #{tpu_custom_call.1} parent=11 // pred_fallthru
          _
        // Predicated region
        $region33: #{tpu_custom_call.1} parent=11 // pred_check
          %p290 = pneg %p171
        $region34: #{tpu_custom_call.1} parent=11 // pred_check_branch
          %292 = sbr.rel (%p290) target = $region36
        $region35: #{tpu_custom_call.1} parent=11 // pred_region
          _
        $region36: #{tpu_custom_call.1} parent=11 // pred_fallthru
          _
        // Predicated region
        $region37: #{tpu_custom_call.1} parent=11 // pred_check
          %p293 = pneg %p192
        $region38: #{tpu_custom_call.1} parent=11 // pred_check_branch
          %295 = sbr.rel (%p293) target = $region40
        $region39: #{tpu_custom_call.1} parent=11 // pred_region
          _
        $region40: #{tpu_custom_call.1} parent=11 // pred_fallthru
          _
        // Predicated region
        $region41: #{tpu_custom_call.1} parent=11 // pred_check
          %p296 = pneg %p213
        $region42: #{tpu_custom_call.1} parent=11 // pred_check_branch
          %298 = sbr.rel (%p296) target = $region44
        $region43: #{tpu_custom_call.1} parent=11 // pred_region
          _
        $region44: #{tpu_custom_call.1} parent=11 // pred_fallthru
          _
        // Predicated region
        $region45: #{tpu_custom_call.1} parent=11 // pred_check
          %p299 = pneg %p234
        $region46: #{tpu_custom_call.1} parent=11 // pred_check_branch
          %301 = sbr.rel (%p299) target = $region48
        $region47: #{tpu_custom_call.1} parent=11 // pred_region
          _
        $region48: #{tpu_custom_call.1} parent=11 // pred_fallthru
          _
      $region12: #{tpu_custom_call.1} parent=5 // pred_fallthru
        _
      %p302 = scmp.lt.s32.totalorder %s19, 2
      // Predicated region
      $region49: #{tpu_custom_call.1} parent=5 // pred_check
        %p303 = pneg %p302
      $region50: #{tpu_custom_call.1} parent=5 // pred_check_branch
        %305 = sbr.rel (%p303) target = $region52
      $region51: #{tpu_custom_call.1} parent=5 // pred_region
        // Predicated region
        $region53: #{tpu_custom_call.1} parent=51 // pred_check
          %p306 = pneg %p39
        $region54: #{tpu_custom_call.1} parent=51 // pred_check_branch
          %308 = sbr.rel (%p306) target = $region56
        $region55: #{tpu_custom_call.1} parent=51 // pred_region
          %p309 = scmp.lt.s32.totalorder %s19, 1
          %s310 = scalar_select %p309, %s19, 1
          %s311 = smul.addr %s310, 8
          %s312 = scalar_lea.vmem %s0, %s311
        $region56: #{tpu_custom_call.1} parent=51 // pred_fallthru
          _
      $region52: #{tpu_custom_call.1} parent=5 // pred_fallthru
        _
      %p313 = scmp.le.s32.totalorder 1, %s19
      %p314 = scmp.lt.s32.totalorder %s19, 3
      %p315 = pnand %p313, %p314
      %p316 = pneg %p315
      // Predicated region
      $region57: #{tpu_custom_call.1} parent=5 // pred_check
        _
      $region58: #{tpu_custom_call.1} parent=5 // pred_check_branch
        %318 = sbr.rel (%p315) target = $region60
      $region59: #{tpu_custom_call.1} parent=5 // pred_region
        %s319 = ssub.s32 %s19, 1
        %p320 = scmp.lt.s32.totalorder %s24, 1
        %s321 = scalar_select %p320, %s24, 1
        %s322 = smul.addr %s321, 8
        %s323 = scalar_lea.vmem %s0, %s322
        %p324 = pneg %p45
        %p325 = pneg %p42
        %p326 = pneg %p66
        %p327 = pneg %p63
        %p328 = pneg %p87
        %p329 = pneg %p84
        %p330 = pneg %p108
        %p331 = pneg %p105
        %p332 = pneg %p129
        %p333 = pneg %p126
        %p334 = pneg %p150
        %p335 = pneg %p147
        %p336 = pneg %p171
        %p337 = pneg %p168
        %p338 = pneg %p192
        %p339 = pneg %p189
        %p340 = pneg %p213
        %p341 = pneg %p210
        %p342 = pneg %p234
        %p343 = pneg %p231
        %p344 = pneg %p260
        %p345 = pneg %p257
        %s346 = sand.u32 %s247, 1
        %s347 = scalar_lea.sflag [#allocation3], %s346
        %s348 = sand.u32 %s247, 1
        %s349 = smul.addr %s348, 8
        %s350 = scalar_lea.vmem [#allocation2], %s349
        %p351 = scmp.lt.s32.totalorder %s24, 1
        %s352 = scalar_select %p351, %s24, 1
        %s353 = smul.addr %s352, 8
        %s354 = scalar_lea.vmem %s0, %s353
        %v355 = vlaneseq
        %v356 = vand.u32 %v355, 127
        %vm357 = vcmp.lt.s32.totalorder %v356, 16
        %v358 = vadd.s32 %v356, 4294967292
        %vm359 = vcmp.ge.s32.totalorder %v358, 0
        %vm360 = vcmp.lt.s32.totalorder %v358, 16
        %vm361 = vmand %vm359, %vm360
        %v362 = vadd.s32 %v356, 4294967294
        %vm363 = vcmp.ge.s32.totalorder %v362, 0
        %vm364 = vcmp.lt.s32.totalorder %v362, 16
        %vm365 = vmand %vm363, %vm364
        %v366 = vadd.s32 %v356, 4294967295
        %vm367 = vcmp.ge.s32.totalorder %v366, 0
        %vm368 = vcmp.lt.s32.totalorder %v366, 16
        %vm369 = vmand %vm367, %vm368
        %v370 = vadd.s32 %v356, 1
        %vm371 = vcmp.ge.s32.totalorder %v370, 0
        %vm372 = vcmp.lt.s32.totalorder %v370, 16
        %vm373 = vmand %vm371, %vm372
        %v374 = vadd.s32 %v356, 2
        %vm375 = vcmp.ge.s32.totalorder %v374, 0
        %vm376 = vcmp.lt.s32.totalorder %v374, 16
        %vm377 = vmand %vm375, %vm376
        %v378 = vadd.s32 %v356, 4
        %vm379 = vcmp.ge.s32.totalorder %v378, 0
        %vm380 = vcmp.lt.s32.totalorder %v378, 16
        %vm381 = vmand %vm379, %vm380
        %v382 = vld [vmem:[%s354] sm:$0xff]
        %v383 = vld [vmem:[%s1] sm:$0xff]
        %v384 = vld [vmem:[%s2] sm:$0xff]
        %v385 = vsel %vm357, 1, 0
        %vm386 = vcmp.eq.s32.totalorder %v385, 1
        %v387 = vsel %vm386, %v382, 0.0
        %388 = vadd.xlane.f32.xlu0 %v387
        %v389 = vpop.xlane.xlu0 %388
        %v390 = vmul.f32 %v389, 0.0625
        %v391 = vmul.f32 %v387, %v387
        %392 = vadd.xlane.f32.xlu0 %v391
        %v393 = vpop.xlane.xlu0 %392
        %v394 = vmul.f32 %v393, 0.0625
        %v395 = vmul.f32 %v390, %v390
        %v396 = vsub.f32 %v394, %v395
        %v397 = vadd.f32 %v396, 1e-05
        %v398 = vrsqrt.pop %v397
        %v399 = vmul.f32 %v383, %v398
        %v400 = vmul.f32 %v390, %v399
        %v401 = vsub.f32 %v384, %v400
        %403 = vset.pattern.permute.xlu0 0
        %404 = vperm.xlu0 %403, %v399
        %v405 = vpop.permute.xlu0 %404
        %v407 = vmul.f32 %v382, %v405
        %409 = vset.pattern.permute.xlu0 0
        %410 = vperm.xlu0 %409, %v401
        %v411 = vpop.permute.xlu0 %410
        %v413 = vadd.f32 %v407, %v411
        %v414 = vmax.f32 %v413, 0.0
        %v415 = vld [vmem:[%s3] sm:$0xf]
        %vm416 = vcmask 64512
        %v418 = vsel %vm416, %v415, 0
        %420 = vmatprep.subr.mxu0 0.0
        %421 = vmatpush1.msra.mxu0 %v414
        %422 = vmatprep.subr.mxu0 0.0
        %423 = vmatpush1.msra.mxu0 0.0
        %424 = vmatprep.subr.mxu0 0.0
        %425 = vmatpush1.msra.mxu0 0.0
        %426 = vmatprep.subr.mxu0 0.0
        %427 = vmatpush1.msra.mxu0 0.0
        %428 = vmatprep.subr.mxu0 0.0
        %429 = vmatpush1.msra.mxu0 0.0
        %430 = vmatprep.subr.mxu0 0.0
        %431 = vmatpush1.msra.mxu0 0.0
        %432 = vmatprep.subr.mxu0 0.0
        %433 = vmatpush1.msra.mxu0 0.0
        %434 = vmatprep.subr.mxu0 0.0
        %435 = vmatpush1.msra.mxu0 0.0
        %436 = vmatprep.subr.mxu0 0.0
        %437 = vmatpush1.msra.mxu0 0.0
        %438 = vmatprep.subr.mxu0 0.0
        %439 = vmatpush1.msra.mxu0 0.0
        %440 = vmatprep.subr.mxu0 0.0
        %441 = vmatpush1.msra.mxu0 0.0
        %442 = vmatprep.subr.mxu0 0.0
        %443 = vmatpush1.msra.mxu0 0.0
        %444 = vmatprep.subr.mxu0 0.0
        %445 = vmatpush1.msra.mxu0 0.0
        %446 = vmatprep.subr.mxu0 0.0
        %447 = vmatpush1.msra.mxu0 0.0
        %448 = vmatprep.subr.mxu0 0.0
        %449 = vmatpush1.msra.mxu0 0.0
        %450 = vmatprep.subr.mxu0 0.0
        %451 = vmatpush1.msra.mxu0 0.0
        %452 = vmatprep.subr.mxu0 0.0
        %453 = vmatpush1.msra.mxu0 0.0
        %454 = vmatprep.subr.mxu0 0.0
        %455 = vmatpush1.msra.mxu0 0.0
        %456 = vmatprep.subr.mxu0 0.0
        %457 = vmatpush1.msra.mxu0 0.0
        %458 = vmatprep.subr.mxu0 0.0
        %459 = vmatpush1.msra.mxu0 0.0
        %460 = vmatprep.subr.mxu0 0.0
        %461 = vmatpush1.msra.mxu0 0.0
        %462 = vmatprep.subr.mxu0 0.0
        %463 = vmatpush1.msra.mxu0 0.0
        %464 = vmatprep.subr.mxu0 0.0
        %465 = vmatpush1.msra.mxu0 0.0
        %466 = vmatprep.subr.mxu0 0.0
        %467 = vmatpush1.msra.mxu0 0.0
        %468 = vmatprep.subr.mxu0 0.0
        %469 = vmatpush1.msra.mxu0 0.0
        %470 = vmatprep.subr.mxu0 0.0
        %471 = vmatpush1.msra.mxu0 0.0
        %472 = vmatprep.subr.mxu0 0.0
        %473 = vmatpush1.msra.mxu0 0.0
        %474 = vmatprep.subr.mxu0 0.0
        %475 = vmatpush1.msra.mxu0 0.0
        %476 = vmatprep.subr.mxu0 0.0
        %477 = vmatpush1.msra.mxu0 0.0
        %478 = vmatprep.subr.mxu0 0.0
        %479 = vmatpush1.msra.mxu0 0.0
        %480 = vmatprep.subr.mxu0 0.0
        %481 = vmatpush1.msra.mxu0 0.0
        %482 = vmatprep.subr.mxu0 0.0
        %483 = vmatpush1.msra.mxu0 0.0
        %484 = vmatprep.mubr.f32.mxu0 0.0
        %485 = vmatmul.mubr.f32.gmra.mrb[0].mxu0 %v418
        %v486 = vpop.f32.mrb[0].mxu0
        %v487 = vadd.f32 0.0, %v486
        %v488 = vpop.f32.mrb[0].mxu0
        %489 = vdwg.mxu0
        %v490 = vld [vmem:[%s4] sm:$0xf]
        %v491 = vld [vmem:[%s5] sm:$0xf]
        %v492 = vsel %vm386, %v487, 0.0
        %vm493 = vcmask 1043456
        %v494 = vsel %vm493, %v492, 0.0
        %495 = vadd.xlane.f32.xlu0 %v494
        %v496 = vpop.xlane.xlu0 %495
        %v497 = vmul.f32 %v496, 0.0625
        %v498 = vmul.f32 %v492, %v492
        %v499 = vsel %vm493, %v498, 0.0
        %500 = vadd.xlane.f32.xlu0 %v499
        %v501 = vpop.xlane.xlu0 %500
        %v502 = vmul.f32 %v501, 0.0625
        %v503 = vmul.f32 %v497, %v497
        %v504 = vsub.f32 %v502, %v503
        %v505 = vadd.f32 %v504, 1e-05
        %v506 = vrsqrt.pop %v505
        %v507 = vmul.f32 %v490, %v506
        %v508 = vmul.f32 %v497, %v507
        %v509 = vsub.f32 %v491, %v508
        %511 = vset.pattern.permute.xlu0 0
        %512 = vperm.xlu0 %511, %v507
        %v513 = vpop.permute.xlu0 %512
        %v515 = vmul.f32 %v487, %v513
        %517 = vset.pattern.permute.xlu0 0
        %518 = vperm.xlu0 %517, %v509
        %v519 = vpop.permute.xlu0 %518
        %v521 = vadd.f32 %v515, %v519
        %v522 = vmax.f32 %v521, 0.0
        %523 = vrot.lane.b32.xlu0 %v522, 1
        %v524 = vpop.permute.xlu0 %523
        %v525 = vsel %vm369, 1, 0
        %vm526 = vcmp.eq.s32.totalorder %v525, 1
        %v527 = vsel %vm526, %v524, 0.0
        %v528 = vld [vmem:[%s6] sm:$0xf]
        %s529 = scalar_lea.vmem %s6, 4
        %v530 = vld [vmem:[%s529] sm:$0xf]
        %vm531 = vcmask 31744
        %v533 = vsel %vm531, %v530, 0
        %v536 = vsel %vm493, %v522, 0
        %538 = vmatprep.subr.mxu0 0.0
        %539 = vmatpush1.msra.mxu0 %v536
        %540 = vmatprep.subr.mxu0 0.0
        %541 = vmatpush1.msra.mxu0 0.0
        %542 = vmatprep.subr.mxu0 0.0
        %543 = vmatpush1.msra.mxu0 0.0
        %544 = vmatprep.subr.mxu0 0.0
        %545 = vmatpush1.msra.mxu0 0.0
        %546 = vmatprep.subr.mxu0 0.0
        %547 = vmatpush1.msra.mxu0 0.0
        %548 = vmatprep.subr.mxu0 0.0
        %549 = vmatpush1.msra.mxu0 0.0
        %550 = vmatprep.subr.mxu0 0.0
        %551 = vmatpush1.msra.mxu0 0.0
        %552 = vmatprep.subr.mxu0 0.0
        %553 = vmatpush1.msra.mxu0 0.0
        %554 = vmatprep.subr.mxu0 0.0
        %555 = vmatpush1.msra.mxu0 0.0
        %556 = vmatprep.subr.mxu0 0.0
        %557 = vmatpush1.msra.mxu0 0.0
        %558 = vmatprep.subr.mxu0 0.0
        %559 = vmatpush1.msra.mxu0 0.0
        %560 = vmatprep.subr.mxu0 0.0
        %561 = vmatpush1.msra.mxu0 0.0
        %562 = vmatprep.subr.mxu0 0.0
        %563 = vmatpush1.msra.mxu0 0.0
        %564 = vmatprep.subr.mxu0 0.0
        %565 = vmatpush1.msra.mxu0 0.0
        %566 = vmatprep.subr.mxu0 0.0
        %567 = vmatpush1.msra.mxu0 0.0
        %568 = vmatprep.subr.mxu0 0.0
        %569 = vmatpush1.msra.mxu0 0.0
        %570 = vmatprep.subr.mxu0 0.0
        %571 = vmatpush1.msra.mxu0 0.0
        %572 = vmatprep.subr.mxu0 0.0
        %573 = vmatpush1.msra.mxu0 0.0
        %574 = vmatprep.subr.mxu0 0.0
        %575 = vmatpush1.msra.mxu0 0.0
        %576 = vmatprep.subr.mxu0 0.0
        %577 = vmatpush1.msra.mxu0 0.0
        %578 = vmatprep.subr.mxu0 0.0
        %579 = vmatpush1.msra.mxu0 0.0
        %580 = vmatprep.subr.mxu0 0.0
        %581 = vmatpush1.msra.mxu0 0.0
        %582 = vmatprep.subr.mxu0 0.0
        %583 = vmatpush1.msra.mxu0 0.0
        %584 = vmatprep.subr.mxu0 0.0
        %585 = vmatpush1.msra.mxu0 0.0
        %586 = vmatprep.subr.mxu0 0.0
        %587 = vmatpush1.msra.mxu0 0.0
        %588 = vmatprep.subr.mxu0 0.0
        %589 = vmatpush1.msra.mxu0 0.0
        %590 = vmatprep.subr.mxu0 0.0
        %591 = vmatpush1.msra.mxu0 0.0
        %592 = vmatprep.subr.mxu0 0.0
        %593 = vmatpush1.msra.mxu0 0.0
        %594 = vmatprep.subr.mxu0 0.0
        %595 = vmatpush1.msra.mxu0 0.0
        %596 = vmatprep.subr.mxu0 0.0
        %597 = vmatpush1.msra.mxu0 0.0
        %598 = vmatprep.subr.mxu0 0.0
        %599 = vmatpush1.msra.mxu0 0.0
        %600 = vmatprep.subr.mxu0 0.0
        %601 = vmatpush1.msra.mxu0 0.0
        %602 = vmatprep.mubr.f32.mxu0 0.0
        %603 = vmatmul.mubr.f32.gmra.mrb[0].mxu0 %v533
        %v604 = vpop.f32.mrb[0].mxu0
        %v605 = vadd.f32 0.0, %v604
        %v606 = vpop.f32.mrb[0].mxu0
        %607 = vdwg.mxu0
        %v609 = vsel %vm531, %v528, 0
        %v612 = vsel %vm493, %v527, 0
        %614 = vmatprep.subr.mxu0 0.0
        %615 = vmatpush1.msra.mxu0 %v612
        %616 = vmatprep.subr.mxu0 0.0
        %617 = vmatpush1.msra.mxu0 0.0
        %618 = vmatprep.subr.mxu0 0.0
        %619 = vmatpush1.msra.mxu0 0.0
        %620 = vmatprep.subr.mxu0 0.0
        %621 = vmatpush1.msra.mxu0 0.0
        %622 = vmatprep.subr.mxu0 0.0
        %623 = vmatpush1.msra.mxu0 0.0
        %624 = vmatprep.subr.mxu0 0.0
        %625 = vmatpush1.msra.mxu0 0.0
        %626 = vmatprep.subr.mxu0 0.0
        %627 = vmatpush1.msra.mxu0 0.0
        %628 = vmatprep.subr.mxu0 0.0
        %629 = vmatpush1.msra.mxu0 0.0
        %630 = vmatprep.subr.mxu0 0.0
        %631 = vmatpush1.msra.mxu0 0.0
        %632 = vmatprep.subr.mxu0 0.0
        %633 = vmatpush1.msra.mxu0 0.0
        %634 = vmatprep.subr.mxu0 0.0
        %635 = vmatpush1.msra.mxu0 0.0
        %636 = vmatprep.subr.mxu0 0.0
        %637 = vmatpush1.msra.mxu0 0.0
        %638 = vmatprep.subr.mxu0 0.0
        %639 = vmatpush1.msra.mxu0 0.0
        %640 = vmatprep.subr.mxu0 0.0
        %641 = vmatpush1.msra.mxu0 0.0
        %642 = vmatprep.subr.mxu0 0.0
        %643 = vmatpush1.msra.mxu0 0.0
        %644 = vmatprep.subr.mxu0 0.0
        %645 = vmatpush1.msra.mxu0 0.0
        %646 = vmatprep.subr.mxu0 0.0
        %647 = vmatpush1.msra.mxu0 0.0
        %648 = vmatprep.subr.mxu0 0.0
        %649 = vmatpush1.msra.mxu0 0.0
        %650 = vmatprep.subr.mxu0 0.0
        %651 = vmatpush1.msra.mxu0 0.0
        %652 = vmatprep.subr.mxu0 0.0
        %653 = vmatpush1.msra.mxu0 0.0
        %654 = vmatprep.subr.mxu0 0.0
        %655 = vmatpush1.msra.mxu0 0.0
        %656 = vmatprep.subr.mxu0 0.0
        %657 = vmatpush1.msra.mxu0 0.0
        %658 = vmatprep.subr.mxu0 0.0
        %659 = vmatpush1.msra.mxu0 0.0
        %660 = vmatprep.subr.mxu0 0.0
        %661 = vmatpush1.msra.mxu0 0.0
        %662 = vmatprep.subr.mxu0 0.0
        %663 = vmatpush1.msra.mxu0 0.0
        %664 = vmatprep.subr.mxu0 0.0
        %665 = vmatpush1.msra.mxu0 0.0
        %666 = vmatprep.subr.mxu0 0.0
        %667 = vmatpush1.msra.mxu0 0.0
        %668 = vmatprep.subr.mxu0 0.0
        %669 = vmatpush1.msra.mxu0 0.0
        %670 = vmatprep.subr.mxu0 0.0
        %671 = vmatpush1.msra.mxu0 0.0
        %672 = vmatprep.subr.mxu0 0.0
        %673 = vmatpush1.msra.mxu0 0.0
        %674 = vmatprep.subr.mxu0 0.0
        %675 = vmatpush1.msra.mxu0 0.0
        %676 = vmatprep.subr.mxu0 0.0
        %677 = vmatpush1.msra.mxu0 0.0
        %678 = vmatprep.mubr.f32.mxu0 0.0
        %679 = vmatmul.mubr.f32.gmra.mrb[0].mxu0 %v609
        %v680 = vpop.f32.mrb[0].mxu0
        %v681 = vadd.f32 %v605, %v680
        %v682 = vpop.f32.mrb[0].mxu0
        %683 = vdwg.mxu0
        %684 = vrot.lane.b32.xlu0 %v522, 127
        %v685 = vpop.permute.xlu0 %684
        %v686 = vsel %vm373, 1, 0
        %vm687 = vcmp.eq.s32.totalorder %v686, 1
        %v688 = vsel %vm687, %v685, 0.0
        %s689 = scalar_lea.vmem %s6, 8
        %v690 = vld [vmem:[%s689] sm:$0xf]
        %v692 = vsel %vm531, %v690, 0
        %v695 = vsel %vm493, %v688, 0
        %697 = vmatprep.subr.mxu0 0.0
        %698 = vmatpush1.msra.mxu0 %v695
        %699 = vmatprep.subr.mxu0 0.0
        %700 = vmatpush1.msra.mxu0 0.0
        %701 = vmatprep.subr.mxu0 0.0
        %702 = vmatpush1.msra.mxu0 0.0
        %703 = vmatprep.subr.mxu0 0.0
        %704 = vmatpush1.msra.mxu0 0.0
        %705 = vmatprep.subr.mxu0 0.0
        %706 = vmatpush1.msra.mxu0 0.0
        %707 = vmatprep.subr.mxu0 0.0
        %708 = vmatpush1.msra.mxu0 0.0
        %709 = vmatprep.subr.mxu0 0.0
        %710 = vmatpush1.msra.mxu0 0.0
        %711 = vmatprep.subr.mxu0 0.0
        %712 = vmatpush1.msra.mxu0 0.0
        %713 = vmatprep.subr.mxu0 0.0
        %714 = vmatpush1.msra.mxu0 0.0
        %715 = vmatprep.subr.mxu0 0.0
        %716 = vmatpush1.msra.mxu0 0.0
        %717 = vmatprep.subr.mxu0 0.0
        %718 = vmatpush1.msra.mxu0 0.0
        %719 = vmatprep.subr.mxu0 0.0
        %720 = vmatpush1.msra.mxu0 0.0
        %721 = vmatprep.subr.mxu0 0.0
        %722 = vmatpush1.msra.mxu0 0.0
        %723 = vmatprep.subr.mxu0 0.0
        %724 = vmatpush1.msra.mxu0 0.0
        %725 = vmatprep.subr.mxu0 0.0
        %726 = vmatpush1.msra.mxu0 0.0
        %727 = vmatprep.subr.mxu0 0.0
        %728 = vmatpush1.msra.mxu0 0.0
        %729 = vmatprep.subr.mxu0 0.0
        %730 = vmatpush1.msra.mxu0 0.0
        %731 = vmatprep.subr.mxu0 0.0
        %732 = vmatpush1.msra.mxu0 0.0
        %733 = vmatprep.subr.mxu0 0.0
        %734 = vmatpush1.msra.mxu0 0.0
        %735 = vmatprep.subr.mxu0 0.0
        %736 = vmatpush1.msra.mxu0 0.0
        %737 = vmatprep.subr.mxu0 0.0
        %738 = vmatpush1.msra.mxu0 0.0
        %739 = vmatprep.subr.mxu0 0.0
        %740 = vmatpush1.msra.mxu0 0.0
        %741 = vmatprep.subr.mxu0 0.0
        %742 = vmatpush1.msra.mxu0 0.0
        %743 = vmatprep.subr.mxu0 0.0
        %744 = vmatpush1.msra.mxu0 0.0
        %745 = vmatprep.subr.mxu0 0.0
        %746 = vmatpush1.msra.mxu0 0.0
        %747 = vmatprep.subr.mxu0 0.0
        %748 = vmatpush1.msra.mxu0 0.0
        %749 = vmatprep.subr.mxu0 0.0
        %750 = vmatpush1.msra.mxu0 0.0
        %751 = vmatprep.subr.mxu0 0.0
        %752 = vmatpush1.msra.mxu0 0.0
        %753 = vmatprep.subr.mxu0 0.0
        %754 = vmatpush1.msra.mxu0 0.0
        %755 = vmatprep.subr.mxu0 0.0
        %756 = vmatpush1.msra.mxu0 0.0
        %757 = vmatprep.subr.mxu0 0.0
        %758 = vmatpush1.msra.mxu0 0.0
        %759 = vmatprep.subr.mxu0 0.0
        %760 = vmatpush1.msra.mxu0 0.0
        %761 = vmatprep.mubr.f32.mxu0 0.0
        %762 = vmatmul.mubr.f32.gmra.mrb[0].mxu0 %v692
        %v763 = vpop.f32.mrb[0].mxu0
        %v764 = vadd.f32 0.0, %v763
        %v765 = vpop.f32.mrb[0].mxu0
        %766 = vdwg.mxu0
        %v767 = vadd.f32 %v681, %v764
        %v768 = vld [vmem:[%s7] sm:$0xf]
        %v769 = vld [vmem:[%s8] sm:$0xf]
        %v770 = vsel %vm386, %v767, 0.0
        %v771 = vsel %vm493, %v770, 0.0
        %772 = vadd.xlane.f32.xlu0 %v771
        %v773 = vpop.xlane.xlu0 %772
        %v774 = vmul.f32 %v773, 0.0625
        %v775 = vmul.f32 %v770, %v770
        %v776 = vsel %vm493, %v775, 0.0
        %777 = vadd.xlane.f32.xlu0 %v776
        %v778 = vpop.xlane.xlu0 %777
        %v779 = vmul.f32 %v778, 0.0625
        %v780 = vmul.f32 %v774, %v774
        %v781 = vsub.f32 %v779, %v780
        %v782 = vadd.f32 %v781, 1e-05
        %v783 = vrsqrt.pop %v782
        %v784 = vmul.f32 %v768, %v783
        %v785 = vmul.f32 %v774, %v784
        %v786 = vsub.f32 %v769, %v785
        %788 = vset.pattern.permute.xlu0 0
        %789 = vperm.xlu0 %788, %v784
        %v790 = vpop.permute.xlu0 %789
        %v792 = vmul.f32 %v767, %v790
        %794 = vset.pattern.permute.xlu0 0
        %795 = vperm.xlu0 %794, %v786
        %v796 = vpop.permute.xlu0 %795
        %v798 = vadd.f32 %v792, %v796
        %v799 = vmax.f32 %v798, 0.0
        %v800 = vld [vmem:[%s9] sm:$0xff]
        %v802 = vsel %vm531, %v800, 0
        %v805 = vsel %vm493, %v799, 0
        %807 = vmatprep.subr.mxu0 0.0
        %808 = vmatpush1.msra.mxu0 %v805
        %809 = vmatprep.subr.mxu0 0.0
        %810 = vmatpush1.msra.mxu0 0.0
        %811 = vmatprep.subr.mxu0 0.0
        %812 = vmatpush1.msra.mxu0 0.0
        %813 = vmatprep.subr.mxu0 0.0
        %814 = vmatpush1.msra.mxu0 0.0
        %815 = vmatprep.subr.mxu0 0.0
        %816 = vmatpush1.msra.mxu0 0.0
        %817 = vmatprep.subr.mxu0 0.0
        %818 = vmatpush1.msra.mxu0 0.0
        %819 = vmatprep.subr.mxu0 0.0
        %820 = vmatpush1.msra.mxu0 0.0
        %821 = vmatprep.subr.mxu0 0.0
        %822 = vmatpush1.msra.mxu0 0.0
        %823 = vmatprep.subr.mxu0 0.0
        %824 = vmatpush1.msra.mxu0 0.0
        %825 = vmatprep.subr.mxu0 0.0
        %826 = vmatpush1.msra.mxu0 0.0
        %827 = vmatprep.subr.mxu0 0.0
        %828 = vmatpush1.msra.mxu0 0.0
        %829 = vmatprep.subr.mxu0 0.0
        %830 = vmatpush1.msra.mxu0 0.0
        %831 = vmatprep.subr.mxu0 0.0
        %832 = vmatpush1.msra.mxu0 0.0
        %833 = vmatprep.subr.mxu0 0.0
        %834 = vmatpush1.msra.mxu0 0.0
        %835 = vmatprep.subr.mxu0 0.0
        %836 = vmatpush1.msra.mxu0 0.0
        %837 = vmatprep.subr.mxu0 0.0
        %838 = vmatpush1.msra.mxu0 0.0
        %839 = vmatprep.subr.mxu0 0.0
        %840 = vmatpush1.msra.mxu0 0.0
        %841 = vmatprep.subr.mxu0 0.0
        %842 = vmatpush1.msra.mxu0 0.0
        %843 = vmatprep.subr.mxu0 0.0
        %844 = vmatpush1.msra.mxu0 0.0
        %845 = vmatprep.subr.mxu0 0.0
        %846 = vmatpush1.msra.mxu0 0.0
        %847 = vmatprep.subr.mxu0 0.0
        %848 = vmatpush1.msra.mxu0 0.0
        %849 = vmatprep.subr.mxu0 0.0
        %850 = vmatpush1.msra.mxu0 0.0
        %851 = vmatprep.subr.mxu0 0.0
        %852 = vmatpush1.msra.mxu0 0.0
        %853 = vmatprep.subr.mxu0 0.0
        %854 = vmatpush1.msra.mxu0 0.0
        %855 = vmatprep.subr.mxu0 0.0
        %856 = vmatpush1.msra.mxu0 0.0
        %857 = vmatprep.subr.mxu0 0.0
        %858 = vmatpush1.msra.mxu0 0.0
        %859 = vmatprep.subr.mxu0 0.0
        %860 = vmatpush1.msra.mxu0 0.0
        %861 = vmatprep.subr.mxu0 0.0
        %862 = vmatpush1.msra.mxu0 0.0
        %863 = vmatprep.subr.mxu0 0.0
        %864 = vmatpush1.msra.mxu0 0.0
        %865 = vmatprep.subr.mxu0 0.0
        %866 = vmatpush1.msra.mxu0 0.0
        %867 = vmatprep.subr.mxu0 0.0
        %868 = vmatpush1.msra.mxu0 0.0
        %869 = vmatprep.subr.mxu0 0.0
        %870 = vmatpush1.msra.mxu0 0.0
        %871 = vmatprep.mubr.f32.mxu0 0.0
        %872 = vmatmul.mubr.f32.gmra.mrb[0].mxu0 %v802
        %v873 = vpop.f32.mrb[0].mxu0
        %v874 = vadd.f32 0.0, %v873
        %v875 = vpop.f32.mrb[0].mxu0
        %876 = vdwg.mxu0
        %v877 = vadd.f32 %v382, %v874
        %s878 = scalar_lea.vmem %s1, 8
        %v879 = vld [vmem:[%s878] sm:$0xff]
        %s880 = scalar_lea.vmem %s2, 8
        %v881 = vld [vmem:[%s880] sm:$0xff]
        %v882 = vsel %vm386, %v877, 0.0
        %883 = vadd.xlane.f32.xlu0 %v882
        %v884 = vpop.xlane.xlu0 %883
        %v885 = vmul.f32 %v884, 0.0625
        %v886 = vmul.f32 %v882, %v882
        %887 = vadd.xlane.f32.xlu0 %v886
        %v888 = vpop.xlane.xlu0 %887
        %v889 = vmul.f32 %v888, 0.0625
        %v890 = vmul.f32 %v885, %v885
        %v891 = vsub.f32 %v889, %v890
        %v892 = vadd.f32 %v891, 1e-05
        %v893 = vrsqrt.pop %v892
        %v894 = vmul.f32 %v879, %v893
        %v895 = vmul.f32 %v885, %v894
        %v896 = vsub.f32 %v881, %v895
        %898 = vset.pattern.permute.xlu0 0
        %899 = vperm.xlu0 %898, %v894
        %v900 = vpop.permute.xlu0 %899
        %v902 = vmul.f32 %v877, %v900
        %904 = vset.pattern.permute.xlu0 0
        %905 = vperm.xlu0 %904, %v896
        %v906 = vpop.permute.xlu0 %905
        %v908 = vadd.f32 %v902, %v906
        %v909 = vmax.f32 %v908, 0.0
        %s910 = scalar_lea.vmem %s3, 4
        %v911 = vld [vmem:[%s910] sm:$0xf]
        %v913 = vsel %vm416, %v911, 0
        %915 = vmatprep.subr.mxu0 0.0
        %916 = vmatpush1.msra.mxu0 %v909
        %917 = vmatprep.subr.mxu0 0.0
        %918 = vmatpush1.msra.mxu0 0.0
        %919 = vmatprep.subr.mxu0 0.0
        %920 = vmatpush1.msra.mxu0 0.0
        %921 = vmatprep.subr.mxu0 0.0
        %922 = vmatpush1.msra.mxu0 0.0
        %923 = vmatprep.subr.mxu0 0.0
        %924 = vmatpush1.msra.mxu0 0.0
        %925 = vmatprep.subr.mxu0 0.0
        %926 = vmatpush1.msra.mxu0 0.0
        %927 = vmatprep.subr.mxu0 0.0
        %928 = vmatpush1.msra.mxu0 0.0
        %929 = vmatprep.subr.mxu0 0.0
        %930 = vmatpush1.msra.mxu0 0.0
        %931 = vmatprep.subr.mxu0 0.0
        %932 = vmatpush1.msra.mxu0 0.0
        %933 = vmatprep.subr.mxu0 0.0
        %934 = vmatpush1.msra.mxu0 0.0
        %935 = vmatprep.subr.mxu0 0.0
        %936 = vmatpush1.msra.mxu0 0.0
        %937 = vmatprep.subr.mxu0 0.0
        %938 = vmatpush1.msra.mxu0 0.0
        %939 = vmatprep.subr.mxu0 0.0
        %940 = vmatpush1.msra.mxu0 0.0
        %941 = vmatprep.subr.mxu0 0.0
        %942 = vmatpush1.msra.mxu0 0.0
        %943 = vmatprep.subr.mxu0 0.0
        %944 = vmatpush1.msra.mxu0 0.0
        %945 = vmatprep.subr.mxu0 0.0
        %946 = vmatpush1.msra.mxu0 0.0
        %947 = vmatprep.subr.mxu0 0.0
        %948 = vmatpush1.msra.mxu0 0.0
        %949 = vmatprep.subr.mxu0 0.0
        %950 = vmatpush1.msra.mxu0 0.0
        %951 = vmatprep.subr.mxu0 0.0
        %952 = vmatpush1.msra.mxu0 0.0
        %953 = vmatprep.subr.mxu0 0.0
        %954 = vmatpush1.msra.mxu0 0.0
        %955 = vmatprep.subr.mxu0 0.0
        %956 = vmatpush1.msra.mxu0 0.0
        %957 = vmatprep.subr.mxu0 0.0
        %958 = vmatpush1.msra.mxu0 0.0
        %959 = vmatprep.subr.mxu0 0.0
        %960 = vmatpush1.msra.mxu0 0.0
        %961 = vmatprep.subr.mxu0 0.0
        %962 = vmatpush1.msra.mxu0 0.0
        %963 = vmatprep.subr.mxu0 0.0
        %964 = vmatpush1.msra.mxu0 0.0
        %965 = vmatprep.subr.mxu0 0.0
        %966 = vmatpush1.msra.mxu0 0.0
        %967 = vmatprep.subr.mxu0 0.0
        %968 = vmatpush1.msra.mxu0 0.0
        %969 = vmatprep.subr.mxu0 0.0
        %970 = vmatpush1.msra.mxu0 0.0
        %971 = vmatprep.subr.mxu0 0.0
        %972 = vmatpush1.msra.mxu0 0.0
        %973 = vmatprep.subr.mxu0 0.0
        %974 = vmatpush1.msra.mxu0 0.0
        %975 = vmatprep.subr.mxu0 0.0
        %976 = vmatpush1.msra.mxu0 0.0
        %977 = vmatprep.subr.mxu0 0.0
        %978 = vmatpush1.msra.mxu0 0.0
        %979 = vmatprep.mubr.f32.mxu0 0.0
        %980 = vmatmul.mubr.f32.gmra.mrb[0].mxu0 %v913
        %v981 = vpop.f32.mrb[0].mxu0
        %v982 = vadd.f32 0.0, %v981
        %v983 = vpop.f32.mrb[0].mxu0
        %984 = vdwg.mxu0
        %s985 = scalar_lea.vmem %s4, 4
        %v986 = vld [vmem:[%s985] sm:$0xf]
        %s987 = scalar_lea.vmem %s5, 4
        %v988 = vld [vmem:[%s987] sm:$0xf]
        %v989 = vsel %vm386, %v982, 0.0
        %v990 = vsel %vm493, %v989, 0.0
        %991 = vadd.xlane.f32.xlu0 %v990
        %v992 = vpop.xlane.xlu0 %991
        %v993 = vmul.f32 %v992, 0.0625
        %v994 = vmul.f32 %v989, %v989
        %v995 = vsel %vm493, %v994, 0.0
        %996 = vadd.xlane.f32.xlu0 %v995
        %v997 = vpop.xlane.xlu0 %996
        %v998 = vmul.f32 %v997, 0.0625
        %v999 = vmul.f32 %v993, %v993
        %v1000 = vsub.f32 %v998, %v999
        %v1001 = vadd.f32 %v1000, 1e-05
        %v1002 = vrsqrt.pop %v1001
        %v1003 = vmul.f32 %v986, %v1002
        %v1004 = vmul.f32 %v993, %v1003
        %v1005 = vsub.f32 %v988, %v1004
        %1007 = vset.pattern.permute.xlu0 0
        %1008 = vperm.xlu0 %1007, %v1003
        %v1009 = vpop.permute.xlu0 %1008
        %v1011 = vmul.f32 %v982, %v1009
        %1013 = vset.pattern.permute.xlu0 0
        %1014 = vperm.xlu0 %1013, %v1005
        %v1015 = vpop.permute.xlu0 %1014
        %v1017 = vadd.f32 %v1011, %v1015
        %v1018 = vmax.f32 %v1017, 0.0
        %1019 = vrot.lane.b32.xlu0 %v1018, 2
        %v1020 = vpop.permute.xlu0 %1019
        %v1021 = vsel %vm365, 1, 0
        %vm1022 = vcmp.eq.s32.totalorder %v1021, 1
        %v1023 = vsel %vm1022, %v1020, 0.0
        %s1024 = scalar_lea.vmem %s6, 12
        %v1025 = vld [vmem:[%s1024] sm:$0xf]
        %s1026 = scalar_lea.vmem %s6, 16
        %v1027 = vld [vmem:[%s1026] sm:$0xf]
        %v1029 = vsel %vm531, %v1027, 0
        %v1032 = vsel %vm493, %v1018, 0
        %1034 = vmatprep.subr.mxu0 0.0
        %1035 = vmatpush1.msra.mxu0 %v1032
        %1036 = vmatprep.subr.mxu0 0.0
        %1037 = vmatpush1.msra.mxu0 0.0
        %1038 = vmatprep.subr.mxu0 0.0
        %1039 = vmatpush1.msra.mxu0 0.0
        %1040 = vmatprep.subr.mxu0 0.0
        %1041 = vmatpush1.msra.mxu0 0.0
        %1042 = vmatprep.subr.mxu0 0.0
        %1043 = vmatpush1.msra.mxu0 0.0
        %1044 = vmatprep.subr.mxu0 0.0
        %1045 = vmatpush1.msra.mxu0 0.0
        %1046 = vmatprep.subr.mxu0 0.0
        %1047 = vmatpush1.msra.mxu0 0.0
        %1048 = vmatprep.subr.mxu0 0.0
        %1049 = vmatpush1.msra.mxu0 0.0
        %1050 = vmatprep.subr.mxu0 0.0
        %1051 = vmatpush1.msra.mxu0 0.0
        %1052 = vmatprep.subr.mxu0 0.0
        %1053 = vmatpush1.msra.mxu0 0.0
        %1054 = vmatprep.subr.mxu0 0.0
        %1055 = vmatpush1.msra.mxu0 0.0
        %1056 = vmatprep.subr.mxu0 0.0
        %1057 = vmatpush1.msra.mxu0 0.0
        %1058 = vmatprep.subr.mxu0 0.0
        %1059 = vmatpush1.msra.mxu0 0.0
        %1060 = vmatprep.subr.mxu0 0.0
        %1061 = vmatpush1.msra.mxu0 0.0
        %1062 = vmatprep.subr.mxu0 0.0
        %1063 = vmatpush1.msra.mxu0 0.0
        %1064 = vmatprep.subr.mxu0 0.0
        %1065 = vmatpush1.msra.mxu0 0.0
        %1066 = vmatprep.subr.mxu0 0.0
        %1067 = vmatpush1.msra.mxu0 0.0
        %1068 = vmatprep.subr.mxu0 0.0
        %1069 = vmatpush1.msra.mxu0 0.0
        %1070 = vmatprep.subr.mxu0 0.0
        %1071 = vmatpush1.msra.mxu0 0.0
        %1072 = vmatprep.subr.mxu0 0.0
        %1073 = vmatpush1.msra.mxu0 0.0
        %1074 = vmatprep.subr.mxu0 0.0
        %1075 = vmatpush1.msra.mxu0 0.0
        %1076 = vmatprep.subr.mxu0 0.0
        %1077 = vmatpush1.msra.mxu0 0.0
        %1078 = vmatprep.subr.mxu0 0.0
        %1079 = vmatpush1.msra.mxu0 0.0
        %1080 = vmatprep.subr.mxu0 0.0
        %1081 = vmatpush1.msra.mxu0 0.0
        %1082 = vmatprep.subr.mxu0 0.0
        %1083 = vmatpush1.msra.mxu0 0.0
        %1084 = vmatprep.subr.mxu0 0.0
        %1085 = vmatpush1.msra.mxu0 0.0
        %1086 = vmatprep.subr.mxu0 0.0
        %1087 = vmatpush1.msra.mxu0 0.0
        %1088 = vmatprep.subr.mxu0 0.0
        %1089 = vmatpush1.msra.mxu0 0.0
        %1090 = vmatprep.subr.mxu0 0.0
        %1091 = vmatpush1.msra.mxu0 0.0
        %1092 = vmatprep.subr.mxu0 0.0
        %1093 = vmatpush1.msra.mxu0 0.0
        %1094 = vmatprep.subr.mxu0 0.0
        %1095 = vmatpush1.msra.mxu0 0.0
        %1096 = vmatprep.subr.mxu0 0.0
        %1097 = vmatpush1.msra.mxu0 0.0
        %1098 = vmatprep.mubr.f32.mxu0 0.0
        %1099 = vmatmul.mubr.f32.gmra.mrb[0].mxu0 %v1029
        %v1100 = vpop.f32.mrb[0].mxu0
        %v1101 = vadd.f32 0.0, %v1100
        %v1102 = vpop.f32.mrb[0].mxu0
        %1103 = vdwg.mxu0
        %v1105 = vsel %vm531, %v1025, 0
        %v1108 = vsel %vm493, %v1023, 0
        %1110 = vmatprep.subr.mxu0 0.0
        %1111 = vmatpush1.msra.mxu0 %v1108
        %1112 = vmatprep.subr.mxu0 0.0
        %1113 = vmatpush1.msra.mxu0 0.0
        %1114 = vmatprep.subr.mxu0 0.0
        %1115 = vmatpush1.msra.mxu0 0.0
        %1116 = vmatprep.subr.mxu0 0.0
        %1117 = vmatpush1.msra.mxu0 0.0
        %1118 = vmatprep.subr.mxu0 0.0
        %1119 = vmatpush1.msra.mxu0 0.0
        %1120 = vmatprep.subr.mxu0 0.0
        %1121 = vmatpush1.msra.mxu0 0.0
        %1122 = vmatprep.subr.mxu0 0.0
        %1123 = vmatpush1.msra.mxu0 0.0
        %1124 = vmatprep.subr.mxu0 0.0
        %1125 = vmatpush1.msra.mxu0 0.0
        %1126 = vmatprep.subr.mxu0 0.0
        %1127 = vmatpush1.msra.mxu0 0.0
        %1128 = vmatprep.subr.mxu0 0.0
        %1129 = vmatpush1.msra.mxu0 0.0
        %1130 = vmatprep.subr.mxu0 0.0
        %1131 = vmatpush1.msra.mxu0 0.0
        %1132 = vmatprep.subr.mxu0 0.0
        %1133 = vmatpush1.msra.mxu0 0.0
        %1134 = vmatprep.subr.mxu0 0.0
        %1135 = vmatpush1.msra.mxu0 0.0
        %1136 = vmatprep.subr.mxu0 0.0
        %1137 = vmatpush1.msra.mxu0 0.0
        %1138 = vmatprep.subr.mxu0 0.0
        %1139 = vmatpush1.msra.mxu0 0.0
        %1140 = vmatprep.subr.mxu0 0.0
        %1141 = vmatpush1.msra.mxu0 0.0
        %1142 = vmatprep.subr.mxu0 0.0
        %1143 = vmatpush1.msra.mxu0 0.0
        %1144 = vmatprep.subr.mxu0 0.0
        %1145 = vmatpush1.msra.mxu0 0.0
        %1146 = vmatprep.subr.mxu0 0.0
        %1147 = vmatpush1.msra.mxu0 0.0
        %1148 = vmatprep.subr.mxu0 0.0
        %1149 = vmatpush1.msra.mxu0 0.0
        %1150 = vmatprep.subr.mxu0 0.0
        %1151 = vmatpush1.msra.mxu0 0.0
        %1152 = vmatprep.subr.mxu0 0.0
        %1153 = vmatpush1.msra.mxu0 0.0
        %1154 = vmatprep.subr.mxu0 0.0
        %1155 = vmatpush1.msra.mxu0 0.0
        %1156 = vmatprep.subr.mxu0 0.0
        %1157 = vmatpush1.msra.mxu0 0.0
        %1158 = vmatprep.subr.mxu0 0.0
        %1159 = vmatpush1.msra.mxu0 0.0
        %1160 = vmatprep.subr.mxu0 0.0
        %1161 = vmatpush1.msra.mxu0 0.0
        %1162 = vmatprep.subr.mxu0 0.0
        %1163 = vmatpush1.msra.mxu0 0.0
        %1164 = vmatprep.subr.mxu0 0.0
        %1165 = vmatpush1.msra.mxu0 0.0
        %1166 = vmatprep.subr.mxu0 0.0
        %1167 = vmatpush1.msra.mxu0 0.0
        %1168 = vmatprep.subr.mxu0 0.0
        %1169 = vmatpush1.msra.mxu0 0.0
        %1170 = vmatprep.subr.mxu0 0.0
        %1171 = vmatpush1.msra.mxu0 0.0
        %1172 = vmatprep.subr.mxu0 0.0
        %1173 = vmatpush1.msra.mxu0 0.0
        %1174 = vmatprep.mubr.f32.mxu0 0.0
        %1175 = vmatmul.mubr.f32.gmra.mrb[0].mxu0 %v1105
        %v1176 = vpop.f32.mrb[0].mxu0
        %v1177 = vadd.f32 %v1101, %v1176
        %v1178 = vpop.f32.mrb[0].mxu0
        %1179 = vdwg.mxu0
        %1180 = vrot.lane.b32.xlu0 %v1018, 126
        %v1181 = vpop.permute.xlu0 %1180
        %v1182 = vsel %vm377, 1, 0
        %vm1183 = vcmp.eq.s32.totalorder %v1182, 1
        %v1184 = vsel %vm1183, %v1181, 0.0
        %s1185 = scalar_lea.vmem %s6, 20
        %v1186 = vld [vmem:[%s1185] sm:$0xf]
        %v1188 = vsel %vm531, %v1186, 0
        %v1191 = vsel %vm493, %v1184, 0
        %1193 = vmatprep.subr.mxu0 0.0
        %1194 = vmatpush1.msra.mxu0 %v1191
        %1195 = vmatprep.subr.mxu0 0.0
        %1196 = vmatpush1.msra.mxu0 0.0
        %1197 = vmatprep.subr.mxu0 0.0
        %1198 = vmatpush1.msra.mxu0 0.0
        %1199 = vmatprep.subr.mxu0 0.0
        %1200 = vmatpush1.msra.mxu0 0.0
        %1201 = vmatprep.subr.mxu0 0.0
        %1202 = vmatpush1.msra.mxu0 0.0
        %1203 = vmatprep.subr.mxu0 0.0
        %1204 = vmatpush1.msra.mxu0 0.0
        %1205 = vmatprep.subr.mxu0 0.0
        %1206 = vmatpush1.msra.mxu0 0.0
        %1207 = vmatprep.subr.mxu0 0.0
        %1208 = vmatpush1.msra.mxu0 0.0
        %1209 = vmatprep.subr.mxu0 0.0
        %1210 = vmatpush1.msra.mxu0 0.0
        %1211 = vmatprep.subr.mxu0 0.0
        %1212 = vmatpush1.msra.mxu0 0.0
        %1213 = vmatprep.subr.mxu0 0.0
        %1214 = vmatpush1.msra.mxu0 0.0
        %1215 = vmatprep.subr.mxu0 0.0
        %1216 = vmatpush1.msra.mxu0 0.0
        %1217 = vmatprep.subr.mxu0 0.0
        %1218 = vmatpush1.msra.mxu0 0.0
        %1219 = vmatprep.subr.mxu0 0.0
        %1220 = vmatpush1.msra.mxu0 0.0
        %1221 = vmatprep.subr.mxu0 0.0
        %1222 = vmatpush1.msra.mxu0 0.0
        %1223 = vmatprep.subr.mxu0 0.0
        %1224 = vmatpush1.msra.mxu0 0.0
        %1225 = vmatprep.subr.mxu0 0.0
        %1226 = vmatpush1.msra.mxu0 0.0
        %1227 = vmatprep.subr.mxu0 0.0
        %1228 = vmatpush1.msra.mxu0 0.0
        %1229 = vmatprep.subr.mxu0 0.0
        %1230 = vmatpush1.msra.mxu0 0.0
        %1231 = vmatprep.subr.mxu0 0.0
        %1232 = vmatpush1.msra.mxu0 0.0
        %1233 = vmatprep.subr.mxu0 0.0
        %1234 = vmatpush1.msra.mxu0 0.0
        %1235 = vmatprep.subr.mxu0 0.0
        %1236 = vmatpush1.msra.mxu0 0.0
        %1237 = vmatprep.subr.mxu0 0.0
        %1238 = vmatpush1.msra.mxu0 0.0
        %1239 = vmatprep.subr.mxu0 0.0
        %1240 = vmatpush1.msra.mxu0 0.0
        %1241 = vmatprep.subr.mxu0 0.0
        %1242 = vmatpush1.msra.mxu0 0.0
        %1243 = vmatprep.subr.mxu0 0.0
        %1244 = vmatpush1.msra.mxu0 0.0
        %1245 = vmatprep.subr.mxu0 0.0
        %1246 = vmatpush1.msra.mxu0 0.0
        %1247 = vmatprep.subr.mxu0 0.0
        %1248 = vmatpush1.msra.mxu0 0.0
        %1249 = vmatprep.subr.mxu0 0.0
        %1250 = vmatpush1.msra.mxu0 0.0
        %1251 = vmatprep.subr.mxu0 0.0
        %1252 = vmatpush1.msra.mxu0 0.0
        %1253 = vmatprep.subr.mxu0 0.0
        %1254 = vmatpush1.msra.mxu0 0.0
        %1255 = vmatprep.subr.mxu0 0.0
        %1256 = vmatpush1.msra.mxu0 0.0
        %1257 = vmatprep.mubr.f32.mxu0 0.0
        %1258 = vmatmul.mubr.f32.gmra.mrb[0].mxu0 %v1188
        %v1259 = vpop.f32.mrb[0].mxu0
        %v1260 = vadd.f32 0.0, %v1259
        %v1261 = vpop.f32.mrb[0].mxu0
        %1262 = vdwg.mxu0
        %v1263 = vadd.f32 %v1177, %v1260
        %s1264 = scalar_lea.vmem %s7, 4
        %v1265 = vld [vmem:[%s1264] sm:$0xf]
        %s1266 = scalar_lea.vmem %s8, 4
        %v1267 = vld [vmem:[%s1266] sm:$0xf]
        %v1268 = vsel %vm386, %v1263, 0.0
        %v1269 = vsel %vm493, %v1268, 0.0
        %1270 = vadd.xlane.f32.xlu0 %v1269
        %v1271 = vpop.xlane.xlu0 %1270
        %v1272 = vmul.f32 %v1271, 0.0625
        %v1273 = vmul.f32 %v1268, %v1268
        %v1274 = vsel %vm493, %v1273, 0.0
        %1275 = vadd.xlane.f32.xlu0 %v1274
        %v1276 = vpop.xlane.xlu0 %1275
        %v1277 = vmul.f32 %v1276, 0.0625
        %v1278 = vmul.f32 %v1272, %v1272
        %v1279 = vsub.f32 %v1277, %v1278
        %v1280 = vadd.f32 %v1279, 1e-05
        %v1281 = vrsqrt.pop %v1280
        %v1282 = vmul.f32 %v1265, %v1281
        %v1283 = vmul.f32 %v1272, %v1282
        %v1284 = vsub.f32 %v1267, %v1283
        %1286 = vset.pattern.permute.xlu0 0
        %1287 = vperm.xlu0 %1286, %v1282
        %v1288 = vpop.permute.xlu0 %1287
        %v1290 = vmul.f32 %v1263, %v1288
        %1292 = vset.pattern.permute.xlu0 0
        %1293 = vperm.xlu0 %1292, %v1284
        %v1294 = vpop.permute.xlu0 %1293
        %v1296 = vadd.f32 %v1290, %v1294
        %v1297 = vmax.f32 %v1296, 0.0
        %s1298 = scalar_lea.vmem %s9, 8
        %v1299 = vld [vmem:[%s1298] sm:$0xff]
        %v1301 = vsel %vm531, %v1299, 0
        %v1304 = vsel %vm493, %v1297, 0
        %1306 = vmatprep.subr.mxu0 0.0
        %1307 = vmatpush1.msra.mxu0 %v1304
        %1308 = vmatprep.subr.mxu0 0.0
        %1309 = vmatpush1.msra.mxu0 0.0
        %1310 = vmatprep.subr.mxu0 0.0
        %1311 = vmatpush1.msra.mxu0 0.0
        %1312 = vmatprep.subr.mxu0 0.0
        %1313 = vmatpush1.msra.mxu0 0.0
        %1314 = vmatprep.subr.mxu0 0.0
        %1315 = vmatpush1.msra.mxu0 0.0
        %1316 = vmatprep.subr.mxu0 0.0
        %1317 = vmatpush1.msra.mxu0 0.0
        %1318 = vmatprep.subr.mxu0 0.0
        %1319 = vmatpush1.msra.mxu0 0.0
        %1320 = vmatprep.subr.mxu0 0.0
        %1321 = vmatpush1.msra.mxu0 0.0
        %1322 = vmatprep.subr.mxu0 0.0
        %1323 = vmatpush1.msra.mxu0 0.0
        %1324 = vmatprep.subr.mxu0 0.0
        %1325 = vmatpush1.msra.mxu0 0.0
        %1326 = vmatprep.subr.mxu0 0.0
        %1327 = vmatpush1.msra.mxu0 0.0
        %1328 = vmatprep.subr.mxu0 0.0
        %1329 = vmatpush1.msra.mxu0 0.0
        %1330 = vmatprep.subr.mxu0 0.0
        %1331 = vmatpush1.msra.mxu0 0.0
        %1332 = vmatprep.subr.mxu0 0.0
        %1333 = vmatpush1.msra.mxu0 0.0
        %1334 = vmatprep.subr.mxu0 0.0
        %1335 = vmatpush1.msra.mxu0 0.0
        %1336 = vmatprep.subr.mxu0 0.0
        %1337 = vmatpush1.msra.mxu0 0.0
        %1338 = vmatprep.subr.mxu0 0.0
        %1339 = vmatpush1.msra.mxu0 0.0
        %1340 = vmatprep.subr.mxu0 0.0
        %1341 = vmatpush1.msra.mxu0 0.0
        %1342 = vmatprep.subr.mxu0 0.0
        %1343 = vmatpush1.msra.mxu0 0.0
        %1344 = vmatprep.subr.mxu0 0.0
        %1345 = vmatpush1.msra.mxu0 0.0
        %1346 = vmatprep.subr.mxu0 0.0
        %1347 = vmatpush1.msra.mxu0 0.0
        %1348 = vmatprep.subr.mxu0 0.0
        %1349 = vmatpush1.msra.mxu0 0.0
        %1350 = vmatprep.subr.mxu0 0.0
        %1351 = vmatpush1.msra.mxu0 0.0
        %1352 = vmatprep.subr.mxu0 0.0
        %1353 = vmatpush1.msra.mxu0 0.0
        %1354 = vmatprep.subr.mxu0 0.0
        %1355 = vmatpush1.msra.mxu0 0.0
        %1356 = vmatprep.subr.mxu0 0.0
        %1357 = vmatpush1.msra.mxu0 0.0
        %1358 = vmatprep.subr.mxu0 0.0
        %1359 = vmatpush1.msra.mxu0 0.0
        %1360 = vmatprep.subr.mxu0 0.0
        %1361 = vmatpush1.msra.mxu0 0.0
        %1362 = vmatprep.subr.mxu0 0.0
        %1363 = vmatpush1.msra.mxu0 0.0
        %1364 = vmatprep.subr.mxu0 0.0
        %1365 = vmatpush1.msra.mxu0 0.0
        %1366 = vmatprep.subr.mxu0 0.0
        %1367 = vmatpush1.msra.mxu0 0.0
        %1368 = vmatprep.subr.mxu0 0.0
        %1369 = vmatpush1.msra.mxu0 0.0
        %1370 = vmatprep.mubr.f32.mxu0 0.0
        %1371 = vmatmul.mubr.f32.gmra.mrb[0].mxu0 %v1301
        %v1372 = vpop.f32.mrb[0].mxu0
        %v1373 = vadd.f32 0.0, %v1372
        %v1374 = vpop.f32.mrb[0].mxu0
        %1375 = vdwg.mxu0
        %v1376 = vadd.f32 %v877, %v1373
        %s1377 = scalar_lea.vmem %s1, 16
        %v1378 = vld [vmem:[%s1377] sm:$0xff]
        %s1379 = scalar_lea.vmem %s2, 16
        %v1380 = vld [vmem:[%s1379] sm:$0xff]
        %v1381 = vsel %vm386, %v1376, 0.0
        %1382 = vadd.xlane.f32.xlu0 %v1381
        %v1383 = vpop.xlane.xlu0 %1382
        %v1384 = vmul.f32 %v1383, 0.0625
        %v1385 = vmul.f32 %v1381, %v1381
        %1386 = vadd.xlane.f32.xlu0 %v1385
        %v1387 = vpop.xlane.xlu0 %1386
        %v1388 = vmul.f32 %v1387, 0.0625
        %v1389 = vmul.f32 %v1384, %v1384
        %v1390 = vsub.f32 %v1388, %v1389
        %v1391 = vadd.f32 %v1390, 1e-05
        %v1392 = vrsqrt.pop %v1391
        %v1393 = vmul.f32 %v1378, %v1392
        %v1394 = vmul.f32 %v1384, %v1393
        %v1395 = vsub.f32 %v1380, %v1394
        %1397 = vset.pattern.permute.xlu0 0
        %1398 = vperm.xlu0 %1397, %v1393
        %v1399 = vpop.permute.xlu0 %1398
        %v1401 = vmul.f32 %v1376, %v1399
        %1403 = vset.pattern.permute.xlu0 0
        %1404 = vperm.xlu0 %1403, %v1395
        %v1405 = vpop.permute.xlu0 %1404
        %v1407 = vadd.f32 %v1401, %v1405
        %v1408 = vmax.f32 %v1407, 0.0
        %s1409 = scalar_lea.vmem %s3, 8
        %v1410 = vld [vmem:[%s1409] sm:$0xf]
        %v1412 = vsel %vm416, %v1410, 0
        %1414 = vmatprep.subr.mxu0 0.0
        %1415 = vmatpush1.msra.mxu0 %v1408
        %1416 = vmatprep.subr.mxu0 0.0
        %1417 = vmatpush1.msra.mxu0 0.0
        %1418 = vmatprep.subr.mxu0 0.0
        %1419 = vmatpush1.msra.mxu0 0.0
        %1420 = vmatprep.subr.mxu0 0.0
        %1421 = vmatpush1.msra.mxu0 0.0
        %1422 = vmatprep.subr.mxu0 0.0
        %1423 = vmatpush1.msra.mxu0 0.0
        %1424 = vmatprep.subr.mxu0 0.0
        %1425 = vmatpush1.msra.mxu0 0.0
        %1426 = vmatprep.subr.mxu0 0.0
        %1427 = vmatpush1.msra.mxu0 0.0
        %1428 = vmatprep.subr.mxu0 0.0
        %1429 = vmatpush1.msra.mxu0 0.0
        %1430 = vmatprep.subr.mxu0 0.0
        %1431 = vmatpush1.msra.mxu0 0.0
        %1432 = vmatprep.subr.mxu0 0.0
        %1433 = vmatpush1.msra.mxu0 0.0
        %1434 = vmatprep.subr.mxu0 0.0
        %1435 = vmatpush1.msra.mxu0 0.0
        %1436 = vmatprep.subr.mxu0 0.0
        %1437 = vmatpush1.msra.mxu0 0.0
        %1438 = vmatprep.subr.mxu0 0.0
        %1439 = vmatpush1.msra.mxu0 0.0
        %1440 = vmatprep.subr.mxu0 0.0
        %1441 = vmatpush1.msra.mxu0 0.0
        %1442 = vmatprep.subr.mxu0 0.0
        %1443 = vmatpush1.msra.mxu0 0.0
        %1444 = vmatprep.subr.mxu0 0.0
        %1445 = vmatpush1.msra.mxu0 0.0
        %1446 = vmatprep.subr.mxu0 0.0
        %1447 = vmatpush1.msra.mxu0 0.0
        %1448 = vmatprep.subr.mxu0 0.0
        %1449 = vmatpush1.msra.mxu0 0.0
        %1450 = vmatprep.subr.mxu0 0.0
        %1451 = vmatpush1.msra.mxu0 0.0
        %1452 = vmatprep.subr.mxu0 0.0
        %1453 = vmatpush1.msra.mxu0 0.0
        %1454 = vmatprep.subr.mxu0 0.0
        %1455 = vmatpush1.msra.mxu0 0.0
        %1456 = vmatprep.subr.mxu0 0.0
        %1457 = vmatpush1.msra.mxu0 0.0
        %1458 = vmatprep.subr.mxu0 0.0
        %1459 = vmatpush1.msra.mxu0 0.0
        %1460 = vmatprep.subr.mxu0 0.0
        %1461 = vmatpush1.msra.mxu0 0.0
        %1462 = vmatprep.subr.mxu0 0.0
        %1463 = vmatpush1.msra.mxu0 0.0
        %1464 = vmatprep.subr.mxu0 0.0
        %1465 = vmatpush1.msra.mxu0 0.0
        %1466 = vmatprep.subr.mxu0 0.0
        %1467 = vmatpush1.msra.mxu0 0.0
        %1468 = vmatprep.subr.mxu0 0.0
        %1469 = vmatpush1.msra.mxu0 0.0
        %1470 = vmatprep.subr.mxu0 0.0
        %1471 = vmatpush1.msra.mxu0 0.0
        %1472 = vmatprep.subr.mxu0 0.0
        %1473 = vmatpush1.msra.mxu0 0.0
        %1474 = vmatprep.subr.mxu0 0.0
        %1475 = vmatpush1.msra.mxu0 0.0
        %1476 = vmatprep.subr.mxu0 0.0
        %1477 = vmatpush1.msra.mxu0 0.0
        %1478 = vmatprep.mubr.f32.mxu0 0.0
        %1479 = vmatmul.mubr.f32.gmra.mrb[0].mxu0 %v1412
        %v1480 = vpop.f32.mrb[0].mxu0
        %v1481 = vadd.f32 0.0, %v1480
        %v1482 = vpop.f32.mrb[0].mxu0
        %1483 = vdwg.mxu0
        %s1484 = scalar_lea.vmem %s4, 8
        %v1485 = vld [vmem:[%s1484] sm:$0xf]
        %s1486 = scalar_lea.vmem %s5, 8
        %v1487 = vld [vmem:[%s1486] sm:$0xf]
        %v1488 = vsel %vm386, %v1481, 0.0
        %v1489 = vsel %vm493, %v1488, 0.0
        %1490 = vadd.xlane.f32.xlu0 %v1489
        %v1491 = vpop.xlane.xlu0 %1490
        %v1492 = vmul.f32 %v1491, 0.0625
        %v1493 = vmul.f32 %v1488, %v1488
        %v1494 = vsel %vm493, %v1493, 0.0
        %1495 = vadd.xlane.f32.xlu0 %v1494
        %v1496 = vpop.xlane.xlu0 %1495
        %v1497 = vmul.f32 %v1496, 0.0625
        %v1498 = vmul.f32 %v1492, %v1492
        %v1499 = vsub.f32 %v1497, %v1498
        %v1500 = vadd.f32 %v1499, 1e-05
        %v1501 = vrsqrt.pop %v1500
        %v1502 = vmul.f32 %v1485, %v1501
        %v1503 = vmul.f32 %v1492, %v1502
        %v1504 = vsub.f32 %v1487, %v1503
        %1506 = vset.pattern.permute.xlu0 0
        %1507 = vperm.xlu0 %1506, %v1502
        %v1508 = vpop.permute.xlu0 %1507
        %v1510 = vmul.f32 %v1481, %v1508
        %1512 = vset.pattern.permute.xlu0 0
        %1513 = vperm.xlu0 %1512, %v1504
        %v1514 = vpop.permute.xlu0 %1513
        %v1516 = vadd.f32 %v1510, %v1514
        %v1517 = vmax.f32 %v1516, 0.0
        %1518 = vrot.lane.b32.xlu0 %v1517, 4
        %v1519 = vpop.permute.xlu0 %1518
        %v1520 = vsel %vm361, 1, 0
        %vm1521 = vcmp.eq.s32.totalorder %v1520, 1
        %v1522 = vsel %vm1521, %v1519, 0.0
        %s1523 = scalar_lea.vmem %s6, 24
        %v1524 = vld [vmem:[%s1523] sm:$0xf]
        %s1525 = scalar_lea.vmem %s6, 28
        %v1526 = vld [vmem:[%s1525] sm:$0xf]
        %v1528 = vsel %vm531, %v1526, 0
        %v1531 = vsel %vm493, %v1517, 0
        %1533 = vmatprep.subr.mxu0 0.0
        %1534 = vmatpush1.msra.mxu0 %v1531
        %1535 = vmatprep.subr.mxu0 0.0
        %1536 = vmatpush1.msra.mxu0 0.0
        %1537 = vmatprep.subr.mxu0 0.0
        %1538 = vmatpush1.msra.mxu0 0.0
        %1539 = vmatprep.subr.mxu0 0.0
        %1540 = vmatpush1.msra.mxu0 0.0
        %1541 = vmatprep.subr.mxu0 0.0
        %1542 = vmatpush1.msra.mxu0 0.0
        %1543 = vmatprep.subr.mxu0 0.0
        %1544 = vmatpush1.msra.mxu0 0.0
        %1545 = vmatprep.subr.mxu0 0.0
        %1546 = vmatpush1.msra.mxu0 0.0
        %1547 = vmatprep.subr.mxu0 0.0
        %1548 = vmatpush1.msra.mxu0 0.0
        %1549 = vmatprep.subr.mxu0 0.0
        %1550 = vmatpush1.msra.mxu0 0.0
        %1551 = vmatprep.subr.mxu0 0.0
        %1552 = vmatpush1.msra.mxu0 0.0
        %1553 = vmatprep.subr.mxu0 0.0
        %1554 = vmatpush1.msra.mxu0 0.0
        %1555 = vmatprep.subr.mxu0 0.0
        %1556 = vmatpush1.msra.mxu0 0.0
        %1557 = vmatprep.subr.mxu0 0.0
        %1558 = vmatpush1.msra.mxu0 0.0
        %1559 = vmatprep.subr.mxu0 0.0
        %1560 = vmatpush1.msra.mxu0 0.0
        %1561 = vmatprep.subr.mxu0 0.0
        %1562 = vmatpush1.msra.mxu0 0.0
        %1563 = vmatprep.subr.mxu0 0.0
        %1564 = vmatpush1.msra.mxu0 0.0
        %1565 = vmatprep.subr.mxu0 0.0
        %1566 = vmatpush1.msra.mxu0 0.0
        %1567 = vmatprep.subr.mxu0 0.0
        %1568 = vmatpush1.msra.mxu0 0.0
        %1569 = vmatprep.subr.mxu0 0.0
        %1570 = vmatpush1.msra.mxu0 0.0
        %1571 = vmatprep.subr.mxu0 0.0
        %1572 = vmatpush1.msra.mxu0 0.0
        %1573 = vmatprep.subr.mxu0 0.0
        %1574 = vmatpush1.msra.mxu0 0.0
        %1575 = vmatprep.subr.mxu0 0.0
        %1576 = vmatpush1.msra.mxu0 0.0
        %1577 = vmatprep.subr.mxu0 0.0
        %1578 = vmatpush1.msra.mxu0 0.0
        %1579 = vmatprep.subr.mxu0 0.0
        %1580 = vmatpush1.msra.mxu0 0.0
        %1581 = vmatprep.subr.mxu0 0.0
        %1582 = vmatpush1.msra.mxu0 0.0
        %1583 = vmatprep.subr.mxu0 0.0
        %1584 = vmatpush1.msra.mxu0 0.0
        %1585 = vmatprep.subr.mxu0 0.0
        %1586 = vmatpush1.msra.mxu0 0.0
        %1587 = vmatprep.subr.mxu0 0.0
        %1588 = vmatpush1.msra.mxu0 0.0
        %1589 = vmatprep.subr.mxu0 0.0
        %1590 = vmatpush1.msra.mxu0 0.0
        %1591 = vmatprep.subr.mxu0 0.0
        %1592 = vmatpush1.msra.mxu0 0.0
        %1593 = vmatprep.subr.mxu0 0.0
        %1594 = vmatpush1.msra.mxu0 0.0
        %1595 = vmatprep.subr.mxu0 0.0
        %1596 = vmatpush1.msra.mxu0 0.0
        %1597 = vmatprep.mubr.f32.mxu0 0.0
        %1598 = vmatmul.mubr.f32.gmra.mrb[0].mxu0 %v1528
        %v1599 = vpop.f32.mrb[0].mxu0
        %v1600 = vadd.f32 0.0, %v1599
        %v1601 = vpop.f32.mrb[0].mxu0
        %1602 = vdwg.mxu0
        %v1604 = vsel %vm531, %v1524, 0
        %v1607 = vsel %vm493, %v1522, 0
        %1609 = vmatprep.subr.mxu0 0.0
        %1610 = vmatpush1.msra.mxu0 %v1607
        %1611 = vmatprep.subr.mxu0 0.0
        %1612 = vmatpush1.msra.mxu0 0.0
        %1613 = vmatprep.subr.mxu0 0.0
        %1614 = vmatpush1.msra.mxu0 0.0
        %1615 = vmatprep.subr.mxu0 0.0
        %1616 = vmatpush1.msra.mxu0 0.0
        %1617 = vmatprep.subr.mxu0 0.0
        %1618 = vmatpush1.msra.mxu0 0.0
        %1619 = vmatprep.subr.mxu0 0.0
        %1620 = vmatpush1.msra.mxu0 0.0
        %1621 = vmatprep.subr.mxu0 0.0
        %1622 = vmatpush1.msra.mxu0 0.0
        %1623 = vmatprep.subr.mxu0 0.0
        %1624 = vmatpush1.msra.mxu0 0.0
        %1625 = vmatprep.subr.mxu0 0.0
        %1626 = vmatpush1.msra.mxu0 0.0
        %1627 = vmatprep.subr.mxu0 0.0
        %1628 = vmatpush1.msra.mxu0 0.0
        %1629 = vmatprep.subr.mxu0 0.0
        %1630 = vmatpush1.msra.mxu0 0.0
        %1631 = vmatprep.subr.mxu0 0.0
        %1632 = vmatpush1.msra.mxu0 0.0
        %1633 = vmatprep.subr.mxu0 0.0
        %1634 = vmatpush1.msra.mxu0 0.0
        %1635 = vmatprep.subr.mxu0 0.0
        %1636 = vmatpush1.msra.mxu0 0.0
        %1637 = vmatprep.subr.mxu0 0.0
        %1638 = vmatpush1.msra.mxu0 0.0
        %1639 = vmatprep.subr.mxu0 0.0
        %1640 = vmatpush1.msra.mxu0 0.0
        %1641 = vmatprep.subr.mxu0 0.0
        %1642 = vmatpush1.msra.mxu0 0.0
        %1643 = vmatprep.subr.mxu0 0.0
        %1644 = vmatpush1.msra.mxu0 0.0
        %1645 = vmatprep.subr.mxu0 0.0
        %1646 = vmatpush1.msra.mxu0 0.0
        %1647 = vmatprep.subr.mxu0 0.0
        %1648 = vmatpush1.msra.mxu0 0.0
        %1649 = vmatprep.subr.mxu0 0.0
        %1650 = vmatpush1.msra.mxu0 0.0
        %1651 = vmatprep.subr.mxu0 0.0
        %1652 = vmatpush1.msra.mxu0 0.0
        %1653 = vmatprep.subr.mxu0 0.0
        %1654 = vmatpush1.msra.mxu0 0.0
        %1655 = vmatprep.subr.mxu0 0.0
        %1656 = vmatpush1.msra.mxu0 0.0
        %1657 = vmatprep.subr.mxu0 0.0
        %1658 = vmatpush1.msra.mxu0 0.0
        %1659 = vmatprep.subr.mxu0 0.0
        %1660 = vmatpush1.msra.mxu0 0.0
        %1661 = vmatprep.subr.mxu0 0.0
        %1662 = vmatpush1.msra.mxu0 0.0
        %1663 = vmatprep.subr.mxu0 0.0
        %1664 = vmatpush1.msra.mxu0 0.0
        %1665 = vmatprep.subr.mxu0 0.0
        %1666 = vmatpush1.msra.mxu0 0.0
        %1667 = vmatprep.subr.mxu0 0.0
        %1668 = vmatpush1.msra.mxu0 0.0
        %1669 = vmatprep.subr.mxu0 0.0
        %1670 = vmatpush1.msra.mxu0 0.0
        %1671 = vmatprep.subr.mxu0 0.0
        %1672 = vmatpush1.msra.mxu0 0.0
        %1673 = vmatprep.mubr.f32.mxu0 0.0
        %1674 = vmatmul.mubr.f32.gmra.mrb[0].mxu0 %v1604
        %v1675 = vpop.f32.mrb[0].mxu0
        %v1676 = vadd.f32 %v1600, %v1675
        %v1677 = vpop.f32.mrb[0].mxu0
        %1678 = vdwg.mxu0
        %1679 = vrot.lane.b32.xlu0 %v1517, 124
        %v1680 = vpop.permute.xlu0 %1679
        %v1681 = vsel %vm381, 1, 0
        %vm1682 = vcmp.eq.s32.totalorder %v1681, 1
        %v1683 = vsel %vm1682, %v1680, 0.0
        %s1684 = scalar_lea.vmem %s6, 32
        %v1685 = vld [vmem:[%s1684] sm:$0xf]
        %v1687 = vsel %vm531, %v1685, 0
        %v1690 = vsel %vm493, %v1683, 0
        %1692 = vmatprep.subr.mxu0 0.0
        %1693 = vmatpush1.msra.mxu0 %v1690
        %1694 = vmatprep.subr.mxu0 0.0
        %1695 = vmatpush1.msra.mxu0 0.0
        %1696 = vmatprep.subr.mxu0 0.0
        %1697 = vmatpush1.msra.mxu0 0.0
        %1698 = vmatprep.subr.mxu0 0.0
        %1699 = vmatpush1.msra.mxu0 0.0
        %1700 = vmatprep.subr.mxu0 0.0
        %1701 = vmatpush1.msra.mxu0 0.0
        %1702 = vmatprep.subr.mxu0 0.0
        %1703 = vmatpush1.msra.mxu0 0.0
        %1704 = vmatprep.subr.mxu0 0.0
        %1705 = vmatpush1.msra.mxu0 0.0
        %1706 = vmatprep.subr.mxu0 0.0
        %1707 = vmatpush1.msra.mxu0 0.0
        %1708 = vmatprep.subr.mxu0 0.0
        %1709 = vmatpush1.msra.mxu0 0.0
        %1710 = vmatprep.subr.mxu0 0.0
        %1711 = vmatpush1.msra.mxu0 0.0
        %1712 = vmatprep.subr.mxu0 0.0
        %1713 = vmatpush1.msra.mxu0 0.0
        %1714 = vmatprep.subr.mxu0 0.0
        %1715 = vmatpush1.msra.mxu0 0.0
        %1716 = vmatprep.subr.mxu0 0.0
        %1717 = vmatpush1.msra.mxu0 0.0
        %1718 = vmatprep.subr.mxu0 0.0
        %1719 = vmatpush1.msra.mxu0 0.0
        %1720 = vmatprep.subr.mxu0 0.0
        %1721 = vmatpush1.msra.mxu0 0.0
        %1722 = vmatprep.subr.mxu0 0.0
        %1723 = vmatpush1.msra.mxu0 0.0
        %1724 = vmatprep.subr.mxu0 0.0
        %1725 = vmatpush1.msra.mxu0 0.0
        %1726 = vmatprep.subr.mxu0 0.0
        %1727 = vmatpush1.msra.mxu0 0.0
        %1728 = vmatprep.subr.mxu0 0.0
        %1729 = vmatpush1.msra.mxu0 0.0
        %1730 = vmatprep.subr.mxu0 0.0
        %1731 = vmatpush1.msra.mxu0 0.0
        %1732 = vmatprep.subr.mxu0 0.0
        %1733 = vmatpush1.msra.mxu0 0.0
        %1734 = vmatprep.subr.mxu0 0.0
        %1735 = vmatpush1.msra.mxu0 0.0
        %1736 = vmatprep.subr.mxu0 0.0
        %1737 = vmatpush1.msra.mxu0 0.0
        %1738 = vmatprep.subr.mxu0 0.0
        %1739 = vmatpush1.msra.mxu0 0.0
        %1740 = vmatprep.subr.mxu0 0.0
        %1741 = vmatpush1.msra.mxu0 0.0
        %1742 = vmatprep.subr.mxu0 0.0
        %1743 = vmatpush1.msra.mxu0 0.0
        %1744 = vmatprep.subr.mxu0 0.0
        %1745 = vmatpush1.msra.mxu0 0.0
        %1746 = vmatprep.subr.mxu0 0.0
        %1747 = vmatpush1.msra.mxu0 0.0
        %1748 = vmatprep.subr.mxu0 0.0
        %1749 = vmatpush1.msra.mxu0 0.0
        %1750 = vmatprep.subr.mxu0 0.0
        %1751 = vmatpush1.msra.mxu0 0.0
        %1752 = vmatprep.subr.mxu0 0.0
        %1753 = vmatpush1.msra.mxu0 0.0
        %1754 = vmatprep.subr.mxu0 0.0
        %1755 = vmatpush1.msra.mxu0 0.0
        %1756 = vmatprep.mubr.f32.mxu0 0.0
        %1757 = vmatmul.mubr.f32.gmra.mrb[0].mxu0 %v1687
        %v1758 = vpop.f32.mrb[0].mxu0
        %v1759 = vadd.f32 0.0, %v1758
        %v1760 = vpop.f32.mrb[0].mxu0
        %1761 = vdwg.mxu0
        %v1762 = vadd.f32 %v1676, %v1759
        %s1763 = scalar_lea.vmem %s7, 8
        %v1764 = vld [vmem:[%s1763] sm:$0xf]
        %s1765 = scalar_lea.vmem %s8, 8
        %v1766 = vld [vmem:[%s1765] sm:$0xf]
        %v1767 = vsel %vm386, %v1762, 0.0
        %v1768 = vsel %vm493, %v1767, 0.0
        %1769 = vadd.xlane.f32.xlu0 %v1768
        %v1770 = vpop.xlane.xlu0 %1769
        %v1771 = vmul.f32 %v1770, 0.0625
        %v1772 = vmul.f32 %v1767, %v1767
        %v1773 = vsel %vm493, %v1772, 0.0
        %1774 = vadd.xlane.f32.xlu0 %v1773
        %v1775 = vpop.xlane.xlu0 %1774
        %v1776 = vmul.f32 %v1775, 0.0625
        %v1777 = vmul.f32 %v1771, %v1771
        %v1778 = vsub.f32 %v1776, %v1777
        %v1779 = vadd.f32 %v1778, 1e-05
        %v1780 = vrsqrt.pop %v1779
        %v1781 = vmul.f32 %v1764, %v1780
        %v1782 = vmul.f32 %v1771, %v1781
        %v1783 = vsub.f32 %v1766, %v1782
        %1785 = vset.pattern.permute.xlu0 0
        %1786 = vperm.xlu0 %1785, %v1781
        %v1787 = vpop.permute.xlu0 %1786
        %v1789 = vmul.f32 %v1762, %v1787
        %1791 = vset.pattern.permute.xlu0 0
        %1792 = vperm.xlu0 %1791, %v1783
        %v1793 = vpop.permute.xlu0 %1792
        %v1795 = vadd.f32 %v1789, %v1793
        %v1796 = vmax.f32 %v1795, 0.0
        %s1797 = scalar_lea.vmem %s9, 16
        %v1798 = vld [vmem:[%s1797] sm:$0xff]
        %v1800 = vsel %vm531, %v1798, 0
        %v1803 = vsel %vm493, %v1796, 0
        %1805 = vmatprep.subr.mxu0 0.0
        %1806 = vmatpush1.msra.mxu0 %v1803
        %1807 = vmatprep.subr.mxu0 0.0
        %1808 = vmatpush1.msra.mxu0 0.0
        %1809 = vmatprep.subr.mxu0 0.0
        %1810 = vmatpush1.msra.mxu0 0.0
        %1811 = vmatprep.subr.mxu0 0.0
        %1812 = vmatpush1.msra.mxu0 0.0
        %1813 = vmatprep.subr.mxu0 0.0
        %1814 = vmatpush1.msra.mxu0 0.0
        %1815 = vmatprep.subr.mxu0 0.0
        %1816 = vmatpush1.msra.mxu0 0.0
        %1817 = vmatprep.subr.mxu0 0.0
        %1818 = vmatpush1.msra.mxu0 0.0
        %1819 = vmatprep.subr.mxu0 0.0
        %1820 = vmatpush1.msra.mxu0 0.0
        %1821 = vmatprep.subr.mxu0 0.0
        %1822 = vmatpush1.msra.mxu0 0.0
        %1823 = vmatprep.subr.mxu0 0.0
        %1824 = vmatpush1.msra.mxu0 0.0
        %1825 = vmatprep.subr.mxu0 0.0
        %1826 = vmatpush1.msra.mxu0 0.0
        %1827 = vmatprep.subr.mxu0 0.0
        %1828 = vmatpush1.msra.mxu0 0.0
        %1829 = vmatprep.subr.mxu0 0.0
        %1830 = vmatpush1.msra.mxu0 0.0
        %1831 = vmatprep.subr.mxu0 0.0
        %1832 = vmatpush1.msra.mxu0 0.0
        %1833 = vmatprep.subr.mxu0 0.0
        %1834 = vmatpush1.msra.mxu0 0.0
        %1835 = vmatprep.subr.mxu0 0.0
        %1836 = vmatpush1.msra.mxu0 0.0
        %1837 = vmatprep.subr.mxu0 0.0
        %1838 = vmatpush1.msra.mxu0 0.0
        %1839 = vmatprep.subr.mxu0 0.0
        %1840 = vmatpush1.msra.mxu0 0.0
        %1841 = vmatprep.subr.mxu0 0.0
        %1842 = vmatpush1.msra.mxu0 0.0
        %1843 = vmatprep.subr.mxu0 0.0
        %1844 = vmatpush1.msra.mxu0 0.0
        %1845 = vmatprep.subr.mxu0 0.0
        %1846 = vmatpush1.msra.mxu0 0.0
        %1847 = vmatprep.subr.mxu0 0.0
        %1848 = vmatpush1.msra.mxu0 0.0
        %1849 = vmatprep.subr.mxu0 0.0
        %1850 = vmatpush1.msra.mxu0 0.0
        %1851 = vmatprep.subr.mxu0 0.0
        %1852 = vmatpush1.msra.mxu0 0.0
        %1853 = vmatprep.subr.mxu0 0.0
        %1854 = vmatpush1.msra.mxu0 0.0
        %1855 = vmatprep.subr.mxu0 0.0
        %1856 = vmatpush1.msra.mxu0 0.0
        %1857 = vmatprep.subr.mxu0 0.0
        %1858 = vmatpush1.msra.mxu0 0.0
        %1859 = vmatprep.subr.mxu0 0.0
        %1860 = vmatpush1.msra.mxu0 0.0
        %1861 = vmatprep.subr.mxu0 0.0
        %1862 = vmatpush1.msra.mxu0 0.0
        %1863 = vmatprep.subr.mxu0 0.0
        %1864 = vmatpush1.msra.mxu0 0.0
        %1865 = vmatprep.subr.mxu0 0.0
        %1866 = vmatpush1.msra.mxu0 0.0
        %1867 = vmatprep.subr.mxu0 0.0
        %1868 = vmatpush1.msra.mxu0 0.0
        %1869 = vmatprep.mubr.f32.mxu0 0.0
        %1870 = vmatmul.mubr.f32.gmra.mrb[0].mxu0 %v1800
        %v1871 = vpop.f32.mrb[0].mxu0
        %v1872 = vadd.f32 0.0, %v1871
        %v1873 = vpop.f32.mrb[0].mxu0
        %1874 = vdwg.mxu0
        %v1875 = vadd.f32 %v1376, %v1872
        %1876 = vst [vmem:[%s350] sm:$0xff] %v1875
        %s1877 = sand.u32 %s247, 1
        %s1878 = scalar_lea.sflag [#allocation3], %s1877
        %s1879 = sand.u32 %s247, 1
        %s1880 = smul.addr %s1879, 8
        %s1881 = scalar_lea.vmem [#allocation2], %s1880
        // Predicated region
        $region61: #{tpu_custom_call.1} parent=59 // pred_check
          %p1882 = pneg %p257
        $region62: #{tpu_custom_call.1} parent=59 // pred_check_branch
          %1884 = sbr.rel (%p1882) target = $region64
        $region63: #{tpu_custom_call.1} parent=59 // pred_region
          %s1886 = ssub.s32 128, 128
          %1887 = vsyncadd %s1878, %s1886
          %s1888 = smul.addr %s24, 128
          %s1889 = scalar_lea.hbm %s10, %s1888
          %s1891 = sshll.u32 %s1881, 4
          %s1892 = int_to_ptr.vmem [resolvable:$true] %s1891
          %1894 = dma.vmem_to_hbm [thread:$0]  %s1892, 128, %s1889, %s1878
        $region64: #{tpu_custom_call.1} parent=59 // pred_fallthru
          _
      $region60: #{tpu_custom_call.1} parent=5 // pred_fallthru
        _
      %p1895 = scmp.le.s32.totalorder 2, %s19
      // Predicated region
      $region65: #{tpu_custom_call.1} parent=5 // pred_check
        %p1896 = pneg %p1895
      $region66: #{tpu_custom_call.1} parent=5 // pred_check_branch
        %1898 = sbr.rel (%p1896) target = $region68
      $region67: #{tpu_custom_call.1} parent=5 // pred_region
        %s1899 = ssub.s32 %s19, 2
        // Predicated region
        $region69: #{tpu_custom_call.1} parent=67 // pred_check
          %p1900 = pneg %p263
        $region70: #{tpu_custom_call.1} parent=67 // pred_check_branch
          %1902 = sbr.rel (%p1900) target = $region72
        $region71: #{tpu_custom_call.1} parent=67 // pred_region
          %s1903 = sand.u32 %s248, 1
          %s1904 = scalar_lea.sflag [#allocation3], %s1903
          %s1905 = sand.u32 %s248, 1
          %s1906 = smul.addr %s1905, 8
          %s1907 = scalar_lea.vmem [#allocation2], %s1906
          %1908 = dma.done %s1904, 128
        $region72: #{tpu_custom_call.1} parent=67 // pred_fallthru
          _
      $region68: #{tpu_custom_call.1} parent=5 // pred_fallthru
        _
    $region6: #{tpu_custom_call.1} parent=1 // loop_footer
      %s23 = sadd.s32 1, %s19
    $region7: #{tpu_custom_call.1} parent=1 // loop_footer_branch
      %18 = sbr.rel target = $region3
    $region8: #{tpu_custom_call.1} parent=1 // loop_exit
      _
    %1909 = vsyncpa [#allocation3], 1
    %s1910 = scalar_lea.sflag [#allocation3], 1
    %1911 = vsyncpa %s1910, 1

</llo_original>
